<compile_context>
chip_gen: v7x
topology: tpu7x:2x2x1
jax: 0.10.0
libtpu: 0.0.40
codegen_flags: <defaults>
</compile_context>

<pallas_src>
from math import sqrt

import jax
import jax.numpy as jnp
from jax import lax
from jax.experimental import pallas as pl
from jax.experimental.pallas import tpu as pltpu


def _make_kernel(K, TH, W_out, Cin, Cout, fuse):
    """Build the WSConv2d row-tile kernel (trace-time specialised)."""

    def kernel(x_ref, w_ref, b_ref, o_ref):
        # x_ref : (1, Hp, Wp, Cin)        bf16, whole padded image (resident
        #                                 across the row-tile grid axis)
        # w_ref : (K*K*Cin, Cout)  bf16   [fused path], WS scale folded in
        #         (K, K, Cin, Cout) bf16  [unfused path, Cin >= 512]
        # b_ref : (1, Cout)        f32
        # o_ref : (1, TH*W_out, Cout)     flat output row tile
        r = pl.program_id(1)
        row0 = pl.multiple_of(r * TH, TH)
        M = TH * W_out

        # Bias initialises the accumulator (single f32 add total).
        acc = jnp.broadcast_to(b_ref[...], (M, Cout)).astype(jnp.float32)

        if fuse:
            # One im2col patch, one MXU push: contraction depth K*K*Cin.
            parts = []
            for kh in range(K):
                for kw in range(K):
                    a = x_ref[0, pl.ds(row0 + kh, TH), pl.ds(kw, W_out), :]
                    parts.append(a.reshape(M, Cin))          # leading-dim merge only
            patch = jnp.concatenate(parts, axis=-1)          # (M, K*K*Cin) bf16
            acc = acc + jnp.dot(patch, w_ref[...],
                                preferred_element_type=jnp.float32)
        else:
            # Cin >= 512: contraction is already >= MXU depth -> skip the lane
            # concatenate entirely, K*K direct dots from ref slices.
            for kh in range(K):
                for kw in range(K):
                    a = x_ref[0, pl.ds(row0 + kh, TH), pl.ds(kw, W_out), :]
                    acc = acc + jnp.dot(a.reshape(M, Cin), w_ref[kh, kw],
                                        preferred_element_type=jnp.float32)

        o_ref[0] = acc.astype(o_ref.dtype)

    return kernel


def _pick_row_tile(h_out, w_out, cin, k):
    """MXU-aware row tile: grow TH (divisor of h_out) until M = TH*W_out reaches a
    healthy MXU row count (>=512, i.e. 2x256 rows on v6e/v7x / 4x128 on v5e), but
    keep the per-step im2col patch within a VMEM budget.  Never forces TH < h_out
    just to create extra grid steps."""
    patch_budget = 4 * 1024 * 1024        # bf16 bytes for the per-step patch
    m_target = 512
    best = 1
    for th in range(1, h_out + 1):
        if h_out % th:
            continue
        m = th * w_out
        patch_bytes = m * k * k * cin * 2
        if th > 1 and patch_bytes > patch_budget:
            break
        best = th
        if m >= m_target:
            break
    return best


def wsconv2d(x_nchw, weight_oihw, bias, *, gain=2, kernel_size=3, stride=1,
             padding=1, out_dtype=None):
    """WSConv2d forward.  x: (N, Cin, H, W); weight: (Cout, Cin, K, K); bias: (Cout,)."""
    assert stride == 1, "ProGAN WSConv2d uses stride=1"
    N, Cin, H, W = x_nchw.shape
    Cout = weight_oihw.shape[0]
    K = kernel_size
    H_out = H + 2 * padding - K + 1
    W_out = W + 2 * padding - K + 1
    Hp, Wp = H + 2 * padding, W + 2 * padding
    scale = sqrt(gain / (Cin * K * K))
    out_dtype = x_nchw.dtype if out_dtype is None else out_dtype

    # NCHW -> NHWC, zero-pad spatially, cast to bf16 (halves input DMA; MXU bf16-native).
    x_nhwc = jnp.transpose(x_nchw, (0, 2, 3, 1)).astype(jnp.bfloat16)
    x_pad = jnp.pad(x_nhwc, ((0, 0), (padding, padding), (padding, padding), (0, 0)))

    # Fold the WS scale into the weights: conv(x*s, W) == conv(x, s*W).
    # HWIO order (kh, kw, cin, cout) matches the patch's (kh, kw, cin) lane order.
    w_hwio = (jnp.transpose(weight_oihw, (2, 3, 1, 0)).astype(jnp.float32)
              * jnp.float32(scale)).astype(jnp.bfloat16)        # (K, K, Cin, Cout)
    fuse = Cin < 512
    if fuse:
        w_arg = w_hwio.reshape(K * K * Cin, Cout)
        w_spec = pl.BlockSpec((K * K * Cin, Cout), lambda n, r: (0, 0))
    else:
        w_arg = w_hwio
        w_spec = pl.BlockSpec((K, K, Cin, Cout), lambda n, r: (0, 0, 0, 0))
    b2d = bias.reshape(1, Cout).astype(jnp.float32)

    TH = _pick_row_tile(H_out, W_out, Cin, K)
    grid = (N, H_out // TH)

    kernel = _make_kernel(K=K, TH=TH, W_out=W_out, Cin=Cin, Cout=Cout, fuse=fuse)

    flops = 2 * N * H_out * W_out * Cout * K * K * Cin
    bytes_accessed = (N * Hp * Wp * Cin * 2                       # padded input (bf16)
                      + K * K * Cin * Cout * 2                    # weights (bf16)
                      + Cout * 4                                  # bias
                      + N * H_out * W_out * Cout * jnp.dtype(out_dtype).itemsize)

    out_flat = pl.pallas_call(
        kernel,
        out_shape=jax.ShapeDtypeStruct((N, H_out * W_out, Cout), out_dtype),
        grid_spec=pltpu.PrefetchScalarGridSpec(
            num_scalar_prefetch=0,
            grid=grid,
            in_specs=[
                # Whole padded image per batch element; block index depends only on n,
                # so it stays resident in VMEM across the row-tile axis (no re-DMA).
                pl.BlockSpec((1, Hp, Wp, Cin), lambda n, r: (n, 0, 0, 0)),
                w_spec,
                pl.BlockSpec((1, Cout), lambda n, r: (0, 0)),
            ],
            out_specs=pl.BlockSpec((1, TH * W_out, Cout), lambda n, r: (n, r, 0)),
        ),
        compiler_params=pltpu.CompilerParams(
            dimension_semantics=("parallel", "parallel"),
            vmem_limit_bytes=64 * 1024 * 1024,
        ),
        cost_estimate=pl.CostEstimate(
            flops=flops, transcendentals=0, bytes_accessed=bytes_accessed),
    )(x_pad, w_arg, b2d)

    # Flat (N, H_out*W_out, Cout) -> NCHW so external semantics match the nn.Module.
    out_nhwc = out_flat.reshape(N, H_out, W_out, Cout)
    return jnp.transpose(out_nhwc, (0, 3, 1, 2))


def _reference(x_nchw, weight_oihw, bias, *, gain=2, kernel_size=3, padding=1):
    Cin = x_nchw.shape[1]
    K = kernel_size
    scale = sqrt(gain / (Cin * K * K))
    y = lax.conv_general_dilated(
        x_nchw * scale, weight_oihw,
        window_strides=(1, 1),
        padding=[(padding, padding), (padding, padding)],
        dimension_numbers=("NCHW", "OIHW", "NCHW"))
    return y + bias.reshape(1, -1, 1, 1)


if __name__ == "__main__":
    # Small shapes consistent with the module: batch=2, in_channels=4,
    # out_channels=8, spatial=16, kernel=3, stride=1, padding=1.
    N, Cin, Cout, H, W, K = 2, 4, 8, 16, 16, 3

    key = jax.random.PRNGKey(0)
    kx, kw, kb = jax.random.split(key, 3)
    x = jax.random.normal(kx, (N, Cin, H, W), dtype=jnp.float32)
    # nn.init.normal_(self.conv.weight) -> standard normal.
    weight = jax.random.normal(kw, (Cout, Cin, K, K), dtype=jnp.float32)
    # bias is zero-initialised in the module, but use a nonzero bias here to
    # exercise the bias path (forward semantics are identical).
    bias = 0.1 * jax.random.normal(kb, (Cout,), dtype=jnp.float32)

    out = wsconv2d(x, weight, bias, gain=2, kernel_size=K, padding=1)
    out = jax.block_until_ready(out)

    ref = _reference(x, weight, bias, gain=2, kernel_size=K, padding=1)
    assert out.shape == (N, Cout, H, W)
    # bf16 MXU operands vs f32 reference -> relaxed tolerance.
    assert jnp.allclose(out, ref, atol=5e-2, rtol=5e-2), "mismatch vs reference"

    print("KERNEL_OK")
</pallas_src>

<mosaic_0001>
module attributes {stable_mosaic.version = 11 : i64} {
  func.func @kernel(%arg0: i32, %arg1: i32, %arg2: memref<1x18x18x4xbf16, #tpu.memory_space<vmem>>, %arg3: memref<36x8xbf16, #tpu.memory_space<vmem>>, %arg4: memref<1x8xf32, #tpu.memory_space<vmem>>, %arg5: memref<1x256x8xf32, #tpu.memory_space<vmem>>) attributes {dimension_semantics = [#tpu.dimension_semantics<parallel>, #tpu.dimension_semantics<parallel>], iteration_bounds = array<i64: 2, 1>, scalar_prefetch = 0 : i64, scratch_operands = 0 : i64, tpu.core_type = #tpu.core_type<tc>, window_params = [{transform_indices = @transform_0, window_bounds = array<i64: 1, 18, 18, 4>}, {pipeline_mode = #tpu.pipeline_mode<synchronous>, transform_indices = @transform_1, window_bounds = array<i64: 36, 8>}, {pipeline_mode = #tpu.pipeline_mode<synchronous>, transform_indices = @transform_2, window_bounds = array<i64: 1, 8>}, {transform_indices = @transform_3, window_bounds = array<i64: 1, 256, 8>}]} {
    %c16_i32 = arith.constant 16 : i32
    %0 = arith.muli %arg1, %c16_i32 : i32
    %1 = tpu.assume_multiple %0, 16 : i32
    %c0 = arith.constant 0 : index
    %c0_0 = arith.constant 0 : index
    %2 = vector.load %arg4[%c0, %c0_0] : memref<1x8xf32, #tpu.memory_space<vmem>>, vector<1x8xf32>
    %3 = vector.shape_cast %2 : vector<1x8xf32> to vector<1x8xf32>
    %4 = vector.broadcast %3 : vector<1x8xf32> to vector<256x8xf32>
    %c0_i32 = arith.constant 0 : i32
    %5 = arith.addi %1, %c0_i32 : i32
    %c0_1 = arith.constant 0 : index
    %6 = arith.index_cast %5 : i32 to index
    %c0_2 = arith.constant 0 : index
    %c0_3 = arith.constant 0 : index
    %7 = vector.load %arg2[%c0_1, %6, %c0_2, %c0_3] : memref<1x18x18x4xbf16, #tpu.memory_space<vmem>>, vector<1x16x16x4xbf16>
    %8 = vector.shape_cast %7 : vector<1x16x16x4xbf16> to vector<16x16x4xbf16>
    %9 = vector.shape_cast %8 : vector<16x16x4xbf16> to vector<256x4xbf16>
    %c0_i32_4 = arith.constant 0 : i32
    %10 = arith.addi %1, %c0_i32_4 : i32
    %c0_5 = arith.constant 0 : index
    %11 = arith.index_cast %10 : i32 to index
    %c1 = arith.constant 1 : index
    %c0_6 = arith.constant 0 : index
    %12 = vector.load %arg2[%c0_5, %11, %c1, %c0_6] : memref<1x18x18x4xbf16, #tpu.memory_space<vmem>>, vector<1x16x16x4xbf16>
    %13 = vector.shape_cast %12 : vector<1x16x16x4xbf16> to vector<16x16x4xbf16>
    %14 = vector.shape_cast %13 : vector<16x16x4xbf16> to vector<256x4xbf16>
    %c0_i32_7 = arith.constant 0 : i32
    %15 = arith.addi %1, %c0_i32_7 : i32
    %c0_8 = arith.constant 0 : index
    %16 = arith.index_cast %15 : i32 to index
    %c2 = arith.constant 2 : index
    %c0_9 = arith.constant 0 : index
    %17 = vector.load %arg2[%c0_8, %16, %c2, %c0_9] : memref<1x18x18x4xbf16, #tpu.memory_space<vmem>>, vector<1x16x16x4xbf16>
    %18 = vector.shape_cast %17 : vector<1x16x16x4xbf16> to vector<16x16x4xbf16>
    %19 = vector.shape_cast %18 : vector<16x16x4xbf16> to vector<256x4xbf16>
    %c1_i32 = arith.constant 1 : i32
    %20 = arith.addi %1, %c1_i32 : i32
    %c0_10 = arith.constant 0 : index
    %21 = arith.index_cast %20 : i32 to index
    %c0_11 = arith.constant 0 : index
    %c0_12 = arith.constant 0 : index
    %22 = vector.load %arg2[%c0_10, %21, %c0_11, %c0_12] : memref<1x18x18x4xbf16, #tpu.memory_space<vmem>>, vector<1x16x16x4xbf16>
    %23 = vector.shape_cast %22 : vector<1x16x16x4xbf16> to vector<16x16x4xbf16>
    %24 = vector.shape_cast %23 : vector<16x16x4xbf16> to vector<256x4xbf16>
    %c1_i32_13 = arith.constant 1 : i32
    %25 = arith.addi %1, %c1_i32_13 : i32
    %c0_14 = arith.constant 0 : index
    %26 = arith.index_cast %25 : i32 to index
    %c1_15 = arith.constant 1 : index
    %c0_16 = arith.constant 0 : index
    %27 = vector.load %arg2[%c0_14, %26, %c1_15, %c0_16] : memref<1x18x18x4xbf16, #tpu.memory_space<vmem>>, vector<1x16x16x4xbf16>
    %28 = vector.shape_cast %27 : vector<1x16x16x4xbf16> to vector<16x16x4xbf16>
    %29 = vector.shape_cast %28 : vector<16x16x4xbf16> to vector<256x4xbf16>
    %c1_i32_17 = arith.constant 1 : i32
    %30 = arith.addi %1, %c1_i32_17 : i32
    %c0_18 = arith.constant 0 : index
    %31 = arith.index_cast %30 : i32 to index
    %c2_19 = arith.constant 2 : index
    %c0_20 = arith.constant 0 : index
    %32 = vector.load %arg2[%c0_18, %31, %c2_19, %c0_20] : memref<1x18x18x4xbf16, #tpu.memory_space<vmem>>, vector<1x16x16x4xbf16>
    %33 = vector.shape_cast %32 : vector<1x16x16x4xbf16> to vector<16x16x4xbf16>
    %34 = vector.shape_cast %33 : vector<16x16x4xbf16> to vector<256x4xbf16>
    %c2_i32 = arith.constant 2 : i32
    %35 = arith.addi %1, %c2_i32 : i32
    %c0_21 = arith.constant 0 : index
    %36 = arith.index_cast %35 : i32 to index
    %c0_22 = arith.constant 0 : index
    %c0_23 = arith.constant 0 : index
    %37 = vector.load %arg2[%c0_21, %36, %c0_22, %c0_23] : memref<1x18x18x4xbf16, #tpu.memory_space<vmem>>, vector<1x16x16x4xbf16>
    %38 = vector.shape_cast %37 : vector<1x16x16x4xbf16> to vector<16x16x4xbf16>
    %39 = vector.shape_cast %38 : vector<16x16x4xbf16> to vector<256x4xbf16>
    %c2_i32_24 = arith.constant 2 : i32
    %40 = arith.addi %1, %c2_i32_24 : i32
    %c0_25 = arith.constant 0 : index
    %41 = arith.index_cast %40 : i32 to index
    %c1_26 = arith.constant 1 : index
    %c0_27 = arith.constant 0 : index
    %42 = vector.load %arg2[%c0_25, %41, %c1_26, %c0_27] : memref<1x18x18x4xbf16, #tpu.memory_space<vmem>>, vector<1x16x16x4xbf16>
    %43 = vector.shape_cast %42 : vector<1x16x16x4xbf16> to vector<16x16x4xbf16>
    %44 = vector.shape_cast %43 : vector<16x16x4xbf16> to vector<256x4xbf16>
    %c2_i32_28 = arith.constant 2 : i32
    %45 = arith.addi %1, %c2_i32_28 : i32
    %c0_29 = arith.constant 0 : index
    %46 = arith.index_cast %45 : i32 to index
    %c2_30 = arith.constant 2 : index
    %c0_31 = arith.constant 0 : index
    %47 = vector.load %arg2[%c0_29, %46, %c2_30, %c0_31] : memref<1x18x18x4xbf16, #tpu.memory_space<vmem>>, vector<1x16x16x4xbf16>
    %48 = vector.shape_cast %47 : vector<1x16x16x4xbf16> to vector<16x16x4xbf16>
    %49 = vector.shape_cast %48 : vector<16x16x4xbf16> to vector<256x4xbf16>
    %50 = tpu.concatenate %9, %14, %19, %24, %29, %34, %39, %44, %49 in 1 : vector<256x4xbf16>, vector<256x4xbf16>, vector<256x4xbf16>, vector<256x4xbf16>, vector<256x4xbf16>, vector<256x4xbf16>, vector<256x4xbf16>, vector<256x4xbf16>, vector<256x4xbf16> -> vector<256x36xbf16>
    %c0_32 = arith.constant 0 : index
    %c0_33 = arith.constant 0 : index
    %51 = vector.load %arg3[%c0_32, %c0_33] : memref<36x8xbf16, #tpu.memory_space<vmem>>, vector<36x8xbf16>
    %cst = arith.constant dense<0.000000e+00> : vector<256x8xf32>
    %52 = tpu.matmul %50, %51, %cst {dimension_numbers = #tpu.dot_dimension_numbers<[1], [0], [0], [1], [0, 0, 1, 1], [], []>} : vector<256x36xbf16>, vector<36x8xbf16>, vector<256x8xf32> -> vector<256x8xf32>
    %53 = arith.addf %4, %52 : vector<256x8xf32>
    %c0_34 = arith.constant 0 : index
    %c0_35 = arith.constant 0 : index
    %c0_36 = arith.constant 0 : index
    %54 = vector.load %arg5[%c0_34, %c0_35, %c0_36] : memref<1x256x8xf32, #tpu.memory_space<vmem>>, vector<1x256x8xf32>
    %55 = vector.shape_cast %54 : vector<1x256x8xf32> to vector<256x8xf32>
    %56 = vector.shape_cast %53 : vector<256x8xf32> to vector<1x256x8xf32>
    tpu.vector_store %arg5[%c0_34, %c0_35, %c0_36], %56 {strides = array<i32>} : memref<1x256x8xf32, #tpu.memory_space<vmem>>, vector<1x256x8xf32>,
    return
  }
  func.func @transform_0(%arg0: i32, %arg1: i32) -> (i32, i32, i32, i32) {
    %c0_i32 = arith.constant 0 : i32
    %c0_i32_0 = arith.constant 0 : i32
    %c0_i32_1 = arith.constant 0 : i32
    %c0_i32_2 = arith.constant 0 : i32
    return %arg0, %c0_i32, %c0_i32_0, %c0_i32_1 : i32, i32, i32, i32
  }
  func.func @transform_1(%arg0: i32, %arg1: i32) -> (i32, i32) {
    %c0_i32 = arith.constant 0 : i32
    %c0_i32_0 = arith.constant 0 : i32
    %c0_i32_1 = arith.constant 0 : i32
    return %c0_i32, %c0_i32_0 : i32, i32
  }
  func.func @transform_2(%arg0: i32, %arg1: i32) -> (i32, i32) {
    %c0_i32 = arith.constant 0 : i32
    %c0_i32_0 = arith.constant 0 : i32
    %c0_i32_1 = arith.constant 0 : i32
    return %c0_i32, %c0_i32_0 : i32, i32
  }
  func.func @transform_3(%arg0: i32, %arg1: i32) -> (i32, i32, i32) {
    %c0_i32 = arith.constant 0 : i32
    %c0_i32_0 = arith.constant 0 : i32
    return %arg0, %arg1, %c0_i32 : i32, i32, i32
  }
}

</mosaic_0001>

<llo_original>
// kernel: tpu_custom_call.1
$region0: #{tpu_custom_call.1}
  #allocation0 [shape = 'u32[]', space=smem, size = 0x4, offset = 0x4, fixed_abs, tag = 'smem constant byte address 0x4 - core index']
  #allocation1 [shape = 'u32[144,128]{1,0:T(1,128)}', space=vmem, size = 0x12000, scoped, tag = 'internal scratch']
  %s0 = inlined_call_operand.hbm [shape: bf16[2,18,18,4], index: 0, kind: input, shape index: {}]
  %s1 = inlined_call_operand.hbm [shape: bf16[36,8], index: 1, kind: input, shape index: {}]
  %s2 = inlined_call_operand.hbm [shape: f32[1,8], index: 2, kind: input, shape index: {}]
  %s3 = inlined_call_operand.hbm [shape: f32[2,256,8], index: 3, kind: output, shape index: {}]
  %s4 = sld [smem:[#allocation0]]
  $region57: #{tpu_custom_call.1} parent=0
    _
  %s6 = ssub.s32 1, %s4
  %s7 = scalar_select 0, %s6, %s4
  $region1: #{tpu_custom_call.1} parent=0
    #allocation2 [shape = 'u8[221184]{0}', space=vmem, size = 0x36000, scoped, tag = 'input window, operand 0']
    #allocation3 [shape = 's32[2]{0}', space=sflag, size = 0x8, scoped, tag = 'scoped memory for tpu_custom_call.1']
    #allocation4 [shape = 's32[2]{0}', space=sflag, size = 0x8, scoped, tag = 'scoped memory for tpu_custom_call.1']
    #allocation5 [shape = 'u8[10240]{0}', space=vmem, size = 0x2800, scoped, tag = 'input window, operand 1, single buffered']
    #allocation6 [shape = 's32[1]{0}', space=sflag, size = 0x4, scoped, tag = 'scoped memory for tpu_custom_call.1']
    #allocation7 [shape = 'u8[512]{0}', space=vmem, size = 0x400, scoped, tag = 'input window, operand 2, single buffered']
    #allocation8 [shape = 'u8[262144]{0}', space=vmem, size = 0x40000, scoped, tag = 'output window, operand 0']
    %8 = vsyncpa [#allocation3], 0
    %s9 = scalar_lea.sflag [#allocation3], 1
    %10 = vsyncpa %s9, 0
    %11 = vsyncpa [#allocation6], 0
    %12 = vsyncpa [#allocation4], 0
    %s13 = scalar_lea.sflag [#allocation4], 1
    %14 = vsyncpa %s13, 0
    loop: start=0, step=1, limit=4
    $region2: #{tpu_custom_call.1} parent=1 // loop_pre_header
      _
    $region3: #{tpu_custom_call.1} parent=1 // loop_header
      %s16 = sphi 0, %s20
      %p17 = scmp.ge.s32.totalorder %s16, 4
      %s23 = sphi 0, %s35
      %s24 = sphi 0, %s31
      %s25 = sphi 0, %s23
      %s26 = sphi 0, %s24
      %s27 = sphi 0, %s25
      %s28 = sphi 0, %s26
      %s38 = sphi 0, %s40
      %s41 = sphi 0, %s38
      %s42 = sphi 0, %s41
      %s58 = sphi 0, %s42
      %s62 = sphi 0, %s62
      %s64 = sphi 0, %s62
      %s65 = sphi 0, %s64
      %s79 = sphi 0, %s65
      %s83 = sphi 0, %s83
      %s85 = sphi 0, %s83
      %s86 = sphi 0, %s85
      %s100 = sphi 0, %s86
      %s108 = sphi 0, %s110
      %s111 = sphi 0, %s108
      %s112 = sphi 0, %s111
      %s128 = sphi 0, %s112
    $region4: #{tpu_custom_call.1} parent=1 // loop_header_branch
      %19 = sbr.rel (%p17) target = $region8
    $region5: #{tpu_custom_call.1} parent=1 // loop_body
      %s21 = ssub.s32 %s16, 1
      %s22 = ssub.s32 %s16, 2
      %s29 = sadd.s32 1, %s24
      %p30 = scmp.ge.s32.totalorder %s29, 1
      %s31 = scalar_select %p30, 0, %s29
      %s32 = sadd.s32 1, %s23
      %s33 = scalar_select %p30, %s32, %s23
      %p34 = scmp.ge.s32.totalorder %s33, 2
      %s35 = scalar_select %p34, 0, %s33
      %s36 = ssub.s32 %s23, %s35
      %p37 = scmp.eq.s32.totalorder %s36, 0
      %s39 = sadd.s32 %s38, 1
      %s40 = scalar_select %p37, %s38, %s39
      %p43 = pneg %p37
      %p44 = scmp.eq.s32.totalorder %s16, 1
      %p45 = por %p43, %p44
      %p46 = scmp.ne.s32.totalorder %s38, %s41
      %p47 = scmp.eq.s32.totalorder %s16, 0
      %p48 = por %p46, %p47
      %p49 = scmp.ne.s32.totalorder %s38, %s41
      %p50 = scmp.eq.s32.totalorder %s21, 1
      %p51 = por %p49, %p50
      %p52 = scmp.ne.s32.totalorder %s41, %s42
      %p53 = scmp.eq.s32.totalorder %s21, 0
      %p54 = por %p52, %p53
      %p55 = scmp.ne.s32.totalorder %s41, %s42
      %p56 = scmp.eq.s32.totalorder %s22, 1
      %p57 = por %p55, %p56
      %p59 = scmp.ne.s32.totalorder %s42, %s58
      %p60 = scmp.eq.s32.totalorder %s22, 0
      %p61 = por %p59, %p60
      %s63 = sadd.s32 %s62, 1
      %p66 = scmp.eq.s32.totalorder %s16, 1
      %p67 = scmp.ne.s32.totalorder %s62, %s64
      %p68 = scmp.eq.s32.totalorder %s16, 0
      %p69 = por %p67, %p68
      %p70 = scmp.ne.s32.totalorder %s62, %s64
      %p71 = scmp.eq.s32.totalorder %s21, 1
      %p72 = por %p70, %p71
      %p73 = scmp.ne.s32.totalorder %s64, %s65
      %p74 = scmp.eq.s32.totalorder %s21, 0
      %p75 = por %p73, %p74
      %p76 = scmp.ne.s32.totalorder %s64, %s65
      %p77 = scmp.eq.s32.totalorder %s22, 1
      %p78 = por %p76, %p77
      %p80 = scmp.ne.s32.totalorder %s65, %s79
      %p81 = scmp.eq.s32.totalorder %s22, 0
      %p82 = por %p80, %p81
      %s84 = sadd.s32 %s83, 1
      %p87 = scmp.eq.s32.totalorder %s16, 1
      %p88 = scmp.ne.s32.totalorder %s83, %s85
      %p89 = scmp.eq.s32.totalorder %s16, 0
      %p90 = por %p88, %p89
      %p91 = scmp.ne.s32.totalorder %s83, %s85
      %p92 = scmp.eq.s32.totalorder %s21, 1
      %p93 = por %p91, %p92
      %p94 = scmp.ne.s32.totalorder %s85, %s86
      %p95 = scmp.eq.s32.totalorder %s21, 0
      %p96 = por %p94, %p95
      %p97 = scmp.ne.s32.totalorder %s85, %s86
      %p98 = scmp.eq.s32.totalorder %s22, 1
      %p99 = por %p97, %p98
      %p101 = scmp.ne.s32.totalorder %s86, %s100
      %p102 = scmp.eq.s32.totalorder %s22, 0
      %p103 = por %p101, %p102
      %s104 = ssub.s32 %s23, %s35
      %s105 = ssub.s32 %s24, %s31
      %s106 = sor.u32 %s104, %s105
      %p107 = scmp.eq.s32.totalorder %s106, 0
      %s109 = sadd.s32 %s108, 1
      %s110 = scalar_select %p107, %s108, %s109
      %p113 = pneg %p107
      %p114 = scmp.eq.s32.totalorder %s16, 1
      %p115 = por %p113, %p114
      %p116 = scmp.ne.s32.totalorder %s108, %s111
      %p117 = scmp.eq.s32.totalorder %s16, 0
      %p118 = por %p116, %p117
      %p119 = scmp.ne.s32.totalorder %s108, %s111
      %p120 = scmp.eq.s32.totalorder %s21, 1
      %p121 = por %p119, %p120
      %p122 = scmp.ne.s32.totalorder %s111, %s112
      %p123 = scmp.eq.s32.totalorder %s21, 0
      %p124 = por %p122, %p123
      %p125 = scmp.ne.s32.totalorder %s111, %s112
      %p126 = scmp.eq.s32.totalorder %s22, 1
      %p127 = por %p125, %p126
      %p129 = scmp.ne.s32.totalorder %s112, %s128
      %p130 = scmp.eq.s32.totalorder %s22, 0
      %p131 = por %p129, %p130
      %p132 = scmp.le.s32.totalorder 1, %s16
      %p133 = scmp.lt.s32.totalorder %s16, 3
      %p134 = pnand %p132, %p133
      %p135 = pneg %p134
      // Predicated region
      $region9: #{tpu_custom_call.1} parent=5 // pred_check
        _
      $region10: #{tpu_custom_call.1} parent=5 // pred_check_branch
        %137 = sbr.rel (%p134) target = $region12
      $region11: #{tpu_custom_call.1} parent=5 // pred_region
        %s138 = ssub.s32 %s16, 1
        // Predicated region
        $region13: #{tpu_custom_call.1} parent=11 // pred_check
          %p139 = pneg %p75
        $region14: #{tpu_custom_call.1} parent=11 // pred_check_branch
          %141 = sbr.rel (%p139) target = $region16
        $region15: #{tpu_custom_call.1} parent=11 // pred_region
          %s143 = ssub.s32 320, 320
          %144 = vsyncadd [#allocation6], %s143
          %s145 = sshll.u32 [#allocation5], 4
          %s146 = int_to_ptr.vmem [resolvable:$true] %s145
          %151 = dma.hbm_to_vmem [thread:$0]  %s1, 320, %s146, [#allocation6], 64, 64, 4
        $region16: #{tpu_custom_call.1} parent=11 // pred_fallthru
          _
        // Predicated region
        $region17: #{tpu_custom_call.1} parent=11 // pred_check
          %p152 = pneg %p96
        $region18: #{tpu_custom_call.1} parent=11 // pred_check_branch
          %154 = sbr.rel (%p152) target = $region20
        $region19: #{tpu_custom_call.1} parent=11 // pred_region
          %s156 = ssub.s32 16, 16
          %157 = vsyncadd [#allocation6], %s156
          %s159 = sshll.u32 [#allocation7], 4
          %s160 = int_to_ptr.vmem [resolvable:$true] %s159
          %162 = dma.hbm_to_vmem [thread:$0]  %s2, 16, %s160, [#allocation6]
        $region20: #{tpu_custom_call.1} parent=11 // pred_fallthru
          _
      $region12: #{tpu_custom_call.1} parent=5 // pred_fallthru
        _
      %p163 = scmp.lt.s32.totalorder %s16, 2
      // Predicated region
      $region21: #{tpu_custom_call.1} parent=5 // pred_check
        %p164 = pneg %p163
      $region22: #{tpu_custom_call.1} parent=5 // pred_check_branch
        %166 = sbr.rel (%p164) target = $region24
      $region23: #{tpu_custom_call.1} parent=5 // pred_region
        // Predicated region
        $region25: #{tpu_custom_call.1} parent=23 // pred_check
          %p167 = pneg %p48
        $region26: #{tpu_custom_call.1} parent=23 // pred_check_branch
          %169 = sbr.rel (%p167) target = $region28
        $region27: #{tpu_custom_call.1} parent=23 // pred_region
          %s170 = sand.u32 %s38, 1
          %s171 = scalar_lea.sflag [#allocation3], %s170
          %s172 = sand.u32 %s38, 1
          %s173 = smul.addr %s172, 216
          %s174 = scalar_lea.vmem [#allocation2], %s173
          %s176 = ssub.s32 3456, 3456
          %177 = vsyncadd %s171, %s176
          %s178 = smul.addr %s23, 54
          %s179 = smul.addr %s178, 64
          %s180 = scalar_lea.hbm %s0, %s179
          %s181 = sshll.u32 %s174, 4
          %s182 = int_to_ptr.vmem [resolvable:$true] %s181
          %187 = dma.hbm_to_vmem [thread:$0]  %s180, 3456, %s182, %s171, 64, 64, 4
        $region28: #{tpu_custom_call.1} parent=23 // pred_fallthru
          _
      $region24: #{tpu_custom_call.1} parent=5 // pred_fallthru
        _
      %p188 = scmp.le.s32.totalorder 1, %s16
      %p189 = scmp.lt.s32.totalorder %s16, 3
      %p190 = pnand %p188, %p189
      %p191 = pneg %p190
      // Predicated region
      $region29: #{tpu_custom_call.1} parent=5 // pred_check
        _
      $region30: #{tpu_custom_call.1} parent=5 // pred_check_branch
        %193 = sbr.rel (%p190) target = $region32
      $region31: #{tpu_custom_call.1} parent=5 // pred_region
        %s194 = ssub.s32 %s16, 1
        %s195 = sand.u32 %s41, 1
        %s196 = scalar_lea.sflag [#allocation3], %s195
        %s197 = sand.u32 %s41, 1
        %s198 = smul.addr %s197, 216
        %s199 = scalar_lea.vmem [#allocation2], %s198
        // Predicated region
        $region33: #{tpu_custom_call.1} parent=31 // pred_check
          %p200 = pneg %p54
        $region34: #{tpu_custom_call.1} parent=31 // pred_check_branch
          %202 = sbr.rel (%p200) target = $region36
        $region35: #{tpu_custom_call.1} parent=31 // pred_region
          %203 = dma.done %s196, 3456
        $region36: #{tpu_custom_call.1} parent=31 // pred_fallthru
          _
        // Predicated region
        $region37: #{tpu_custom_call.1} parent=31 // pred_check
          %p204 = pneg %p75
        $region38: #{tpu_custom_call.1} parent=31 // pred_check_branch
          %206 = sbr.rel (%p204) target = $region40
        $region39: #{tpu_custom_call.1} parent=31 // pred_region
          %207 = dma.done [#allocation6], 320
        $region40: #{tpu_custom_call.1} parent=31 // pred_fallthru
          _
        // Predicated region
        $region41: #{tpu_custom_call.1} parent=31 // pred_check
          %p208 = pneg %p96
        $region42: #{tpu_custom_call.1} parent=31 // pred_check_branch
          %210 = sbr.rel (%p208) target = $region44
        $region43: #{tpu_custom_call.1} parent=31 // pred_region
          %211 = dma.done [#allocation6], 16
        $region44: #{tpu_custom_call.1} parent=31 // pred_fallthru
          _
        %s212 = sand.u32 %s41, 1
        %s213 = scalar_lea.sflag [#allocation3], %s212
        %s214 = sand.u32 %s41, 1
        %s215 = smul.addr %s214, 216
        %s216 = scalar_lea.vmem [#allocation2], %s215
        %p217 = pneg %p54
        %p218 = pneg %p51
        %p219 = pneg %p75
        %p220 = pneg %p72
        %p221 = pneg %p96
        %p222 = pneg %p93
        %p223 = pneg %p124
        %p224 = pneg %p121
        %s225 = sand.u32 %s111, 1
        %s226 = scalar_lea.sflag [#allocation4], %s225
        %s227 = sand.u32 %s111, 1
        %s228 = smul.addr %s227, 256
        %s229 = scalar_lea.vmem [#allocation8], %s228
        %s230 = smul.u32 32, %s26
        %s232 = smul.u32 %s26, 16
        %v233 = vld [vmem:[#allocation7] sm:$0x1]
        %v235 = vlaneseq
        %v236 = vshrl.u32 %v235, 7
        %v237 = vsub.s32 0, %v236
        %v238 = vrot.slane %v233, %v237
        %s240 = smul.u32 %s232, 3
        %s241 = smul.addr %s240, 4
        %s242 = scalar_lea.vmem %s199, %s241 [#allocation2]
        %v243 = vld [vmem:[%s242] sm:$0xf]
        %v244 = vld [vmem:[%s242 + $0x4] sm:$0xf]
        %v245 = vld [vmem:[%s242 + $0xc] sm:$0xf]
        %v246 = vld [vmem:[%s242 + $0x10] sm:$0xf]
        %v247 = vld [vmem:[%s242 + $0x18] sm:$0xf]
        %v248 = vld [vmem:[%s242 + $0x1c] sm:$0xf]
        %v249 = vld [vmem:[%s242 + $0x24] sm:$0xf]
        %v250 = vld [vmem:[%s242 + $0x28] sm:$0xf]
        %v251 = vld [vmem:[%s242 + $0x30] sm:$0xf]
        %v252 = vld [vmem:[%s242 + $0x34] sm:$0xf]
        %v253 = vld [vmem:[%s242 + $0x3c] sm:$0xf]
        %v254 = vld [vmem:[%s242 + $0x40] sm:$0xf]
        %v255 = vld [vmem:[%s242 + $0x48] sm:$0xf]
        %v256 = vld [vmem:[%s242 + $0x4c] sm:$0xf]
        %v257 = vld [vmem:[%s242 + $0x54] sm:$0xf]
        %v258 = vld [vmem:[%s242 + $0x58] sm:$0xf]
        %v259 = vld [vmem:[%s242 + $0x60] sm:$0xf]
        %v260 = vld [vmem:[%s242 + $0x64] sm:$0xf]
        %v261 = vld [vmem:[%s242 + $0x6c] sm:$0xf]
        %v262 = vld [vmem:[%s242 + $0x70] sm:$0xf]
        %v263 = vld [vmem:[%s242 + $0x78] sm:$0xf]
        %v264 = vld [vmem:[%s242 + $0x7c] sm:$0xf]
        %v265 = vld [vmem:[%s242 + $0x84] sm:$0xf]
        %v266 = vld [vmem:[%s242 + $0x88] sm:$0xf]
        %v267 = vld [vmem:[%s242 + $0x90] sm:$0xf]
        %v268 = vld [vmem:[%s242 + $0x94] sm:$0xf]
        %v269 = vld [vmem:[%s242 + $0x9c] sm:$0xf]
        %v270 = vld [vmem:[%s242 + $0xa0] sm:$0xf]
        %v271 = vld [vmem:[%s242 + $0xa8] sm:$0xf]
        %v272 = vld [vmem:[%s242 + $0xac] sm:$0xf]
        %v273 = vld [vmem:[%s242 + $0xb4] sm:$0xf]
        %v274 = vld [vmem:[%s242 + $0xb8] sm:$0xf]
        %v275 = vld [vmem:[%s242 + $0x8] sm:$0x1]
        %v276 = vld [vmem:[%s242 + $0x14] sm:$0x1]
        %v277 = vld [vmem:[%s242 + $0x20] sm:$0x1]
        %v278 = vld [vmem:[%s242 + $0x2c] sm:$0x1]
        %v279 = vld [vmem:[%s242 + $0x38] sm:$0x1]
        %v280 = vld [vmem:[%s242 + $0x44] sm:$0x1]
        %v281 = vld [vmem:[%s242 + $0x50] sm:$0x1]
        %v282 = vld [vmem:[%s242 + $0x5c] sm:$0x1]
        %v283 = vld [vmem:[%s242 + $0x68] sm:$0x1]
        %v284 = vld [vmem:[%s242 + $0x74] sm:$0x1]
        %v285 = vld [vmem:[%s242 + $0x80] sm:$0x1]
        %v286 = vld [vmem:[%s242 + $0x8c] sm:$0x1]
        %v287 = vld [vmem:[%s242 + $0x98] sm:$0x1]
        %v288 = vld [vmem:[%s242 + $0xa4] sm:$0x1]
        %v289 = vld [vmem:[%s242 + $0xb0] sm:$0x1]
        %v290 = vld [vmem:[%s242 + $0xbc] sm:$0x1]
        %vm291 = vsmask.f32 3328
        %vm292 = vsmask.f32 7440
        %vm293 = vmor %vm291, %vm292
        %v295 = vshrl.u32 %v243, 16
        %v297 = vrot.slane %v295, 4
        %v298 = vshll.u32 %v243, 16
        %v300 = vrot.slane %v298, 5
        %v301 = vor.u32 %v297, %v300
        %v302 = vrot.slane %v301, 4
        %v304 = vshll.u32 %v244, 16
        %v306 = vrot.slane %v304, 5
        %v307 = vsel %vm293, %v302, %v306
        %v308 = vshrl.u32 %v244, 16
        %v310 = vrot.slane %v308, 4
        %v311 = vor.u32 %v310, %v306
        %v312 = vrot.slane %v311, 4
        %v314 = vshll.u32 %v275, 16
        %v316 = vrot.slane %v314, 5
        %v317 = vsel %vm293, %v312, %v316
        %v319 = vshrl.u32 %v245, 16
        %v321 = vrot.slane %v319, 4
        %v322 = vshll.u32 %v245, 16
        %v324 = vrot.slane %v322, 5
        %v325 = vor.u32 %v321, %v324
        %v326 = vrot.slane %v325, 4
        %v328 = vshll.u32 %v246, 16
        %v330 = vrot.slane %v328, 5
        %v331 = vsel %vm293, %v326, %v330
        %v332 = vshrl.u32 %v246, 16
        %v334 = vrot.slane %v332, 4
        %v335 = vor.u32 %v334, %v330
        %v336 = vrot.slane %v335, 4
        %v338 = vshll.u32 %v276, 16
        %v340 = vrot.slane %v338, 5
        %v341 = vsel %vm293, %v336, %v340
        %v343 = vshrl.u32 %v247, 16
        %v345 = vrot.slane %v343, 4
        %v346 = vshll.u32 %v247, 16
        %v348 = vrot.slane %v346, 5
        %v349 = vor.u32 %v345, %v348
        %v350 = vrot.slane %v349, 4
        %v352 = vshll.u32 %v248, 16
        %v354 = vrot.slane %v352, 5
        %v355 = vsel %vm293, %v350, %v354
        %v356 = vshrl.u32 %v248, 16
        %v358 = vrot.slane %v356, 4
        %v359 = vor.u32 %v358, %v354
        %v360 = vrot.slane %v359, 4
        %v362 = vshll.u32 %v277, 16
        %v364 = vrot.slane %v362, 5
        %v365 = vsel %vm293, %v360, %v364
        %v367 = vshrl.u32 %v249, 16
        %v369 = vrot.slane %v367, 4
        %v370 = vshll.u32 %v249, 16
        %v372 = vrot.slane %v370, 5
        %v373 = vor.u32 %v369, %v372
        %v374 = vrot.slane %v373, 4
        %v376 = vshll.u32 %v250, 16
        %v378 = vrot.slane %v376, 5
        %v379 = vsel %vm293, %v374, %v378
        %v380 = vshrl.u32 %v250, 16
        %v382 = vrot.slane %v380, 4
        %v383 = vor.u32 %v382, %v378
        %v384 = vrot.slane %v383, 4
        %v386 = vshll.u32 %v278, 16
        %v388 = vrot.slane %v386, 5
        %v389 = vsel %vm293, %v384, %v388
        %v391 = vshrl.u32 %v251, 16
        %v393 = vrot.slane %v391, 4
        %v394 = vshll.u32 %v251, 16
        %v396 = vrot.slane %v394, 5
        %v397 = vor.u32 %v393, %v396
        %v398 = vrot.slane %v397, 4
        %v400 = vshll.u32 %v252, 16
        %v402 = vrot.slane %v400, 5
        %v403 = vsel %vm293, %v398, %v402
        %v404 = vshrl.u32 %v252, 16
        %v406 = vrot.slane %v404, 4
        %v407 = vor.u32 %v406, %v402
        %v408 = vrot.slane %v407, 4
        %v410 = vshll.u32 %v279, 16
        %v412 = vrot.slane %v410, 5
        %v413 = vsel %vm293, %v408, %v412
        %v415 = vshrl.u32 %v253, 16
        %v417 = vrot.slane %v415, 4
        %v418 = vshll.u32 %v253, 16
        %v420 = vrot.slane %v418, 5
        %v421 = vor.u32 %v417, %v420
        %v422 = vrot.slane %v421, 4
        %v424 = vshll.u32 %v254, 16
        %v426 = vrot.slane %v424, 5
        %v427 = vsel %vm293, %v422, %v426
        %v428 = vshrl.u32 %v254, 16
        %v430 = vrot.slane %v428, 4
        %v431 = vor.u32 %v430, %v426
        %v432 = vrot.slane %v431, 4
        %v434 = vshll.u32 %v280, 16
        %v436 = vrot.slane %v434, 5
        %v437 = vsel %vm293, %v432, %v436
        %v439 = vshrl.u32 %v255, 16
        %v441 = vrot.slane %v439, 4
        %v442 = vshll.u32 %v255, 16
        %v444 = vrot.slane %v442, 5
        %v445 = vor.u32 %v441, %v444
        %v446 = vrot.slane %v445, 4
        %v448 = vshll.u32 %v256, 16
        %v450 = vrot.slane %v448, 5
        %v451 = vsel %vm293, %v446, %v450
        %v452 = vshrl.u32 %v256, 16
        %v454 = vrot.slane %v452, 4
        %v455 = vor.u32 %v454, %v450
        %v456 = vrot.slane %v455, 4
        %v458 = vshll.u32 %v281, 16
        %v460 = vrot.slane %v458, 5
        %v461 = vsel %vm293, %v456, %v460
        %v463 = vshrl.u32 %v257, 16
        %v465 = vrot.slane %v463, 4
        %v466 = vshll.u32 %v257, 16
        %v468 = vrot.slane %v466, 5
        %v469 = vor.u32 %v465, %v468
        %v470 = vrot.slane %v469, 4
        %v472 = vshll.u32 %v258, 16
        %v474 = vrot.slane %v472, 5
        %v475 = vsel %vm293, %v470, %v474
        %v476 = vshrl.u32 %v258, 16
        %v478 = vrot.slane %v476, 4
        %v479 = vor.u32 %v478, %v474
        %v480 = vrot.slane %v479, 4
        %v482 = vshll.u32 %v282, 16
        %v484 = vrot.slane %v482, 5
        %v485 = vsel %vm293, %v480, %v484
        %v487 = vshrl.u32 %v259, 16
        %v489 = vrot.slane %v487, 4
        %v490 = vshll.u32 %v259, 16
        %v492 = vrot.slane %v490, 5
        %v493 = vor.u32 %v489, %v492
        %v494 = vrot.slane %v493, 4
        %v496 = vshll.u32 %v260, 16
        %v498 = vrot.slane %v496, 5
        %v499 = vsel %vm293, %v494, %v498
        %v500 = vshrl.u32 %v260, 16
        %v502 = vrot.slane %v500, 4
        %v503 = vor.u32 %v502, %v498
        %v504 = vrot.slane %v503, 4
        %v506 = vshll.u32 %v283, 16
        %v508 = vrot.slane %v506, 5
        %v509 = vsel %vm293, %v504, %v508
        %v511 = vshrl.u32 %v261, 16
        %v513 = vrot.slane %v511, 4
        %v514 = vshll.u32 %v261, 16
        %v516 = vrot.slane %v514, 5
        %v517 = vor.u32 %v513, %v516
        %v518 = vrot.slane %v517, 4
        %v520 = vshll.u32 %v262, 16
        %v522 = vrot.slane %v520, 5
        %v523 = vsel %vm293, %v518, %v522
        %v524 = vshrl.u32 %v262, 16
        %v526 = vrot.slane %v524, 4
        %v527 = vor.u32 %v526, %v522
        %v528 = vrot.slane %v527, 4
        %v530 = vshll.u32 %v284, 16
        %v532 = vrot.slane %v530, 5
        %v533 = vsel %vm293, %v528, %v532
        %v535 = vshrl.u32 %v263, 16
        %v537 = vrot.slane %v535, 4
        %v538 = vshll.u32 %v263, 16
        %v540 = vrot.slane %v538, 5
        %v541 = vor.u32 %v537, %v540
        %v542 = vrot.slane %v541, 4
        %v544 = vshll.u32 %v264, 16
        %v546 = vrot.slane %v544, 5
        %v547 = vsel %vm293, %v542, %v546
        %v548 = vshrl.u32 %v264, 16
        %v550 = vrot.slane %v548, 4
        %v551 = vor.u32 %v550, %v546
        %v552 = vrot.slane %v551, 4
        %v554 = vshll.u32 %v285, 16
        %v556 = vrot.slane %v554, 5
        %v557 = vsel %vm293, %v552, %v556
        %v559 = vshrl.u32 %v265, 16
        %v561 = vrot.slane %v559, 4
        %v562 = vshll.u32 %v265, 16
        %v564 = vrot.slane %v562, 5
        %v565 = vor.u32 %v561, %v564
        %v566 = vrot.slane %v565, 4
        %v568 = vshll.u32 %v266, 16
        %v570 = vrot.slane %v568, 5
        %v571 = vsel %vm293, %v566, %v570
        %v572 = vshrl.u32 %v266, 16
        %v574 = vrot.slane %v572, 4
        %v575 = vor.u32 %v574, %v570
        %v576 = vrot.slane %v575, 4
        %v578 = vshll.u32 %v286, 16
        %v580 = vrot.slane %v578, 5
        %v581 = vsel %vm293, %v576, %v580
        %v583 = vshrl.u32 %v267, 16
        %v585 = vrot.slane %v583, 4
        %v586 = vshll.u32 %v267, 16
        %v588 = vrot.slane %v586, 5
        %v589 = vor.u32 %v585, %v588
        %v590 = vrot.slane %v589, 4
        %v592 = vshll.u32 %v268, 16
        %v594 = vrot.slane %v592, 5
        %v595 = vsel %vm293, %v590, %v594
        %v596 = vshrl.u32 %v268, 16
        %v598 = vrot.slane %v596, 4
        %v599 = vor.u32 %v598, %v594
        %v600 = vrot.slane %v599, 4
        %v602 = vshll.u32 %v287, 16
        %v604 = vrot.slane %v602, 5
        %v605 = vsel %vm293, %v600, %v604
        %v607 = vshrl.u32 %v269, 16
        %v609 = vrot.slane %v607, 4
        %v610 = vshll.u32 %v269, 16
        %v612 = vrot.slane %v610, 5
        %v613 = vor.u32 %v609, %v612
        %v614 = vrot.slane %v613, 4
        %v616 = vshll.u32 %v270, 16
        %v618 = vrot.slane %v616, 5
        %v619 = vsel %vm293, %v614, %v618
        %v620 = vshrl.u32 %v270, 16
        %v622 = vrot.slane %v620, 4
        %v623 = vor.u32 %v622, %v618
        %v624 = vrot.slane %v623, 4
        %v626 = vshll.u32 %v288, 16
        %v628 = vrot.slane %v626, 5
        %v629 = vsel %vm293, %v624, %v628
        %v631 = vshrl.u32 %v271, 16
        %v633 = vrot.slane %v631, 4
        %v634 = vshll.u32 %v271, 16
        %v636 = vrot.slane %v634, 5
        %v637 = vor.u32 %v633, %v636
        %v638 = vrot.slane %v637, 4
        %v640 = vshll.u32 %v272, 16
        %v642 = vrot.slane %v640, 5
        %v643 = vsel %vm293, %v638, %v642
        %v644 = vshrl.u32 %v272, 16
        %v646 = vrot.slane %v644, 4
        %v647 = vor.u32 %v646, %v642
        %v648 = vrot.slane %v647, 4
        %v650 = vshll.u32 %v289, 16
        %v652 = vrot.slane %v650, 5
        %v653 = vsel %vm293, %v648, %v652
        %v655 = vshrl.u32 %v273, 16
        %v657 = vrot.slane %v655, 4
        %v658 = vshll.u32 %v273, 16
        %v660 = vrot.slane %v658, 5
        %v661 = vor.u32 %v657, %v660
        %v662 = vrot.slane %v661, 4
        %v664 = vshll.u32 %v274, 16
        %v666 = vrot.slane %v664, 5
        %v667 = vsel %vm293, %v662, %v666
        %v668 = vshrl.u32 %v274, 16
        %v670 = vrot.slane %v668, 4
        %v671 = vor.u32 %v670, %v666
        %v672 = vrot.slane %v671, 4
        %v674 = vshll.u32 %v290, 16
        %v676 = vrot.slane %v674, 5
        %v677 = vsel %vm293, %v672, %v676
        %v678 = vld [vmem:[%s242] sm:$0xe]
        %v679 = vld [vmem:[%s242 + $0xc] sm:$0xe]
        %v680 = vld [vmem:[%s242 + $0x18] sm:$0xe]
        %v681 = vld [vmem:[%s242 + $0x24] sm:$0xe]
        %v682 = vld [vmem:[%s242 + $0x30] sm:$0xe]
        %v683 = vld [vmem:[%s242 + $0x3c] sm:$0xe]
        %v684 = vld [vmem:[%s242 + $0x48] sm:$0xe]
        %v685 = vld [vmem:[%s242 + $0x54] sm:$0xe]
        %v686 = vld [vmem:[%s242 + $0x60] sm:$0xe]
        %v687 = vld [vmem:[%s242 + $0x6c] sm:$0xe]
        %v688 = vld [vmem:[%s242 + $0x78] sm:$0xe]
        %v689 = vld [vmem:[%s242 + $0x84] sm:$0xe]
        %v690 = vld [vmem:[%s242 + $0x90] sm:$0xe]
        %v691 = vld [vmem:[%s242 + $0x9c] sm:$0xe]
        %v692 = vld [vmem:[%s242 + $0xa8] sm:$0xe]
        %v693 = vld [vmem:[%s242 + $0xb4] sm:$0xe]
        %vm742 = vcmask 1042432
        %vm743 = vcmask 1046532
        %vm744 = vmor %vm742, %vm743
        %v745 = vrot.slane %v678, 5
        %v746 = vrot.slane %v745, 4
        %v747 = vrot.slane %v244, 5
        %v748 = vsel %vm744, %v746, %v747
        %v749 = vrot.slane %v747, 4
        %v750 = vrot.slane %v275, 5
        %v751 = vsel %vm744, %v749, %v750
        %v752 = vrot.slane %v679, 5
        %v753 = vrot.slane %v752, 4
        %v754 = vrot.slane %v246, 5
        %v755 = vsel %vm744, %v753, %v754
        %v756 = vrot.slane %v754, 4
        %v757 = vrot.slane %v276, 5
        %v758 = vsel %vm744, %v756, %v757
        %v759 = vrot.slane %v680, 5
        %v760 = vrot.slane %v759, 4
        %v761 = vrot.slane %v248, 5
        %v762 = vsel %vm744, %v760, %v761
        %v763 = vrot.slane %v761, 4
        %v764 = vrot.slane %v277, 5
        %v765 = vsel %vm744, %v763, %v764
        %v766 = vrot.slane %v681, 5
        %v767 = vrot.slane %v766, 4
        %v768 = vrot.slane %v250, 5
        %v769 = vsel %vm744, %v767, %v768
        %v770 = vrot.slane %v768, 4
        %v771 = vrot.slane %v278, 5
        %v772 = vsel %vm744, %v770, %v771
        %v773 = vrot.slane %v682, 5
        %v774 = vrot.slane %v773, 4
        %v775 = vrot.slane %v252, 5
        %v776 = vsel %vm744, %v774, %v775
        %v777 = vrot.slane %v775, 4
        %v778 = vrot.slane %v279, 5
        %v779 = vsel %vm744, %v777, %v778
        %v780 = vrot.slane %v683, 5
        %v781 = vrot.slane %v780, 4
        %v782 = vrot.slane %v254, 5
        %v783 = vsel %vm744, %v781, %v782
        %v784 = vrot.slane %v782, 4
        %v785 = vrot.slane %v280, 5
        %v786 = vsel %vm744, %v784, %v785
        %v787 = vrot.slane %v684, 5
        %v788 = vrot.slane %v787, 4
        %v789 = vrot.slane %v256, 5
        %v790 = vsel %vm744, %v788, %v789
        %v791 = vrot.slane %v789, 4
        %v792 = vrot.slane %v281, 5
        %v793 = vsel %vm744, %v791, %v792
        %v794 = vrot.slane %v685, 5
        %v795 = vrot.slane %v794, 4
        %v796 = vrot.slane %v258, 5
        %v797 = vsel %vm744, %v795, %v796
        %v798 = vrot.slane %v796, 4
        %v799 = vrot.slane %v282, 5
        %v800 = vsel %vm744, %v798, %v799
        %v801 = vrot.slane %v686, 5
        %v802 = vrot.slane %v801, 4
        %v803 = vrot.slane %v260, 5
        %v804 = vsel %vm744, %v802, %v803
        %v805 = vrot.slane %v803, 4
        %v806 = vrot.slane %v283, 5
        %v807 = vsel %vm744, %v805, %v806
        %v808 = vrot.slane %v687, 5
        %v809 = vrot.slane %v808, 4
        %v810 = vrot.slane %v262, 5
        %v811 = vsel %vm744, %v809, %v810
        %v812 = vrot.slane %v810, 4
        %v813 = vrot.slane %v284, 5
        %v814 = vsel %vm744, %v812, %v813
        %v815 = vrot.slane %v688, 5
        %v816 = vrot.slane %v815, 4
        %v817 = vrot.slane %v264, 5
        %v818 = vsel %vm744, %v816, %v817
        %v819 = vrot.slane %v817, 4
        %v820 = vrot.slane %v285, 5
        %v821 = vsel %vm744, %v819, %v820
        %v822 = vrot.slane %v689, 5
        %v823 = vrot.slane %v822, 4
        %v824 = vrot.slane %v266, 5
        %v825 = vsel %vm744, %v823, %v824
        %v826 = vrot.slane %v824, 4
        %v827 = vrot.slane %v286, 5
        %v828 = vsel %vm744, %v826, %v827
        %v829 = vrot.slane %v690, 5
        %v830 = vrot.slane %v829, 4
        %v831 = vrot.slane %v268, 5
        %v832 = vsel %vm744, %v830, %v831
        %v833 = vrot.slane %v831, 4
        %v834 = vrot.slane %v287, 5
        %v835 = vsel %vm744, %v833, %v834
        %v836 = vrot.slane %v691, 5
        %v837 = vrot.slane %v836, 4
        %v838 = vrot.slane %v270, 5
        %v839 = vsel %vm744, %v837, %v838
        %v840 = vrot.slane %v838, 4
        %v841 = vrot.slane %v288, 5
        %v842 = vsel %vm744, %v840, %v841
        %v843 = vrot.slane %v692, 5
        %v844 = vrot.slane %v843, 4
        %v845 = vrot.slane %v272, 5
        %v846 = vsel %vm744, %v844, %v845
        %v847 = vrot.slane %v845, 4
        %v848 = vrot.slane %v289, 5
        %v849 = vsel %vm744, %v847, %v848
        %v850 = vrot.slane %v693, 5
        %v851 = vrot.slane %v850, 4
        %v852 = vrot.slane %v274, 5
        %v853 = vsel %vm744, %v851, %v852
        %v854 = vrot.slane %v852, 4
        %v855 = vrot.slane %v290, 5
        %v856 = vsel %vm744, %v854, %v855
        %s857 = sadd.s32 %s232, 1
        %s858 = smul.u32 %s857, 3
        %s859 = smul.addr %s858, 4
        %s860 = scalar_lea.vmem %s199, %s859 [#allocation2]
        %v861 = vld [vmem:[%s860] sm:$0xf]
        %v862 = vld [vmem:[%s860 + $0x4] sm:$0xf]
        %v863 = vld [vmem:[%s860 + $0xc] sm:$0xf]
        %v864 = vld [vmem:[%s860 + $0x10] sm:$0xf]
        %v865 = vld [vmem:[%s860 + $0x18] sm:$0xf]
        %v866 = vld [vmem:[%s860 + $0x1c] sm:$0xf]
        %v867 = vld [vmem:[%s860 + $0x24] sm:$0xf]
        %v868 = vld [vmem:[%s860 + $0x28] sm:$0xf]
        %v869 = vld [vmem:[%s860 + $0x30] sm:$0xf]
        %v870 = vld [vmem:[%s860 + $0x34] sm:$0xf]
        %v871 = vld [vmem:[%s860 + $0x3c] sm:$0xf]
        %v872 = vld [vmem:[%s860 + $0x40] sm:$0xf]
        %v873 = vld [vmem:[%s860 + $0x48] sm:$0xf]
        %v874 = vld [vmem:[%s860 + $0x4c] sm:$0xf]
        %v875 = vld [vmem:[%s860 + $0x54] sm:$0xf]
        %v876 = vld [vmem:[%s860 + $0x58] sm:$0xf]
        %v877 = vld [vmem:[%s860 + $0x60] sm:$0xf]
        %v878 = vld [vmem:[%s860 + $0x64] sm:$0xf]
        %v879 = vld [vmem:[%s860 + $0x6c] sm:$0xf]
        %v880 = vld [vmem:[%s860 + $0x70] sm:$0xf]
        %v881 = vld [vmem:[%s860 + $0x78] sm:$0xf]
        %v882 = vld [vmem:[%s860 + $0x7c] sm:$0xf]
        %v883 = vld [vmem:[%s860 + $0x84] sm:$0xf]
        %v884 = vld [vmem:[%s860 + $0x88] sm:$0xf]
        %v885 = vld [vmem:[%s860 + $0x90] sm:$0xf]
        %v886 = vld [vmem:[%s860 + $0x94] sm:$0xf]
        %v887 = vld [vmem:[%s860 + $0x9c] sm:$0xf]
        %v888 = vld [vmem:[%s860 + $0xa0] sm:$0xf]
        %v889 = vld [vmem:[%s860 + $0xa8] sm:$0xf]
        %v890 = vld [vmem:[%s860 + $0xac] sm:$0xf]
        %v891 = vld [vmem:[%s860 + $0xb4] sm:$0xf]
        %v892 = vld [vmem:[%s860 + $0xb8] sm:$0xf]
        %v893 = vld [vmem:[%s860 + $0x8] sm:$0x1]
        %v894 = vld [vmem:[%s860 + $0x14] sm:$0x1]
        %v895 = vld [vmem:[%s860 + $0x20] sm:$0x1]
        %v896 = vld [vmem:[%s860 + $0x2c] sm:$0x1]
        %v897 = vld [vmem:[%s860 + $0x38] sm:$0x1]
        %v898 = vld [vmem:[%s860 + $0x44] sm:$0x1]
        %v899 = vld [vmem:[%s860 + $0x50] sm:$0x1]
        %v900 = vld [vmem:[%s860 + $0x5c] sm:$0x1]
        %v901 = vld [vmem:[%s860 + $0x68] sm:$0x1]
        %v902 = vld [vmem:[%s860 + $0x74] sm:$0x1]
        %v903 = vld [vmem:[%s860 + $0x80] sm:$0x1]
        %v904 = vld [vmem:[%s860 + $0x8c] sm:$0x1]
        %v905 = vld [vmem:[%s860 + $0x98] sm:$0x1]
        %v906 = vld [vmem:[%s860 + $0xa4] sm:$0x1]
        %v907 = vld [vmem:[%s860 + $0xb0] sm:$0x1]
        %v908 = vld [vmem:[%s860 + $0xbc] sm:$0x1]
        %v910 = vshrl.u32 %v861, 16
        %v912 = vrot.slane %v910, 4
        %v913 = vshll.u32 %v861, 16
        %v915 = vrot.slane %v913, 5
        %v916 = vor.u32 %v912, %v915
        %v917 = vrot.slane %v916, 4
        %v919 = vshll.u32 %v862, 16
        %v921 = vrot.slane %v919, 5
        %v922 = vsel %vm293, %v917, %v921
        %v923 = vshrl.u32 %v862, 16
        %v925 = vrot.slane %v923, 4
        %v926 = vor.u32 %v925, %v921
        %v927 = vrot.slane %v926, 4
        %v929 = vshll.u32 %v893, 16
        %v931 = vrot.slane %v929, 5
        %v932 = vsel %vm293, %v927, %v931
        %v934 = vshrl.u32 %v863, 16
        %v936 = vrot.slane %v934, 4
        %v937 = vshll.u32 %v863, 16
        %v939 = vrot.slane %v937, 5
        %v940 = vor.u32 %v936, %v939
        %v941 = vrot.slane %v940, 4
        %v943 = vshll.u32 %v864, 16
        %v945 = vrot.slane %v943, 5
        %v946 = vsel %vm293, %v941, %v945
        %v947 = vshrl.u32 %v864, 16
        %v949 = vrot.slane %v947, 4
        %v950 = vor.u32 %v949, %v945
        %v951 = vrot.slane %v950, 4
        %v953 = vshll.u32 %v894, 16
        %v955 = vrot.slane %v953, 5
        %v956 = vsel %vm293, %v951, %v955
        %v958 = vshrl.u32 %v865, 16
        %v960 = vrot.slane %v958, 4
        %v961 = vshll.u32 %v865, 16
        %v963 = vrot.slane %v961, 5
        %v964 = vor.u32 %v960, %v963
        %v965 = vrot.slane %v964, 4
        %v967 = vshll.u32 %v866, 16
        %v969 = vrot.slane %v967, 5
        %v970 = vsel %vm293, %v965, %v969
        %v971 = vshrl.u32 %v866, 16
        %v973 = vrot.slane %v971, 4
        %v974 = vor.u32 %v973, %v969
        %v975 = vrot.slane %v974, 4
        %v977 = vshll.u32 %v895, 16
        %v979 = vrot.slane %v977, 5
        %v980 = vsel %vm293, %v975, %v979
        %v982 = vshrl.u32 %v867, 16
        %v984 = vrot.slane %v982, 4
        %v985 = vshll.u32 %v867, 16
        %v987 = vrot.slane %v985, 5
        %v988 = vor.u32 %v984, %v987
        %v989 = vrot.slane %v988, 4
        %v991 = vshll.u32 %v868, 16
        %v993 = vrot.slane %v991, 5
        %v994 = vsel %vm293, %v989, %v993
        %v995 = vshrl.u32 %v868, 16
        %v997 = vrot.slane %v995, 4
        %v998 = vor.u32 %v997, %v993
        %v999 = vrot.slane %v998, 4
        %v1001 = vshll.u32 %v896, 16
        %v1003 = vrot.slane %v1001, 5
        %v1004 = vsel %vm293, %v999, %v1003
        %v1006 = vshrl.u32 %v869, 16
        %v1008 = vrot.slane %v1006, 4
        %v1009 = vshll.u32 %v869, 16
        %v1011 = vrot.slane %v1009, 5
        %v1012 = vor.u32 %v1008, %v1011
        %v1013 = vrot.slane %v1012, 4
        %v1015 = vshll.u32 %v870, 16
        %v1017 = vrot.slane %v1015, 5
        %v1018 = vsel %vm293, %v1013, %v1017
        %v1019 = vshrl.u32 %v870, 16
        %v1021 = vrot.slane %v1019, 4
        %v1022 = vor.u32 %v1021, %v1017
        %v1023 = vrot.slane %v1022, 4
        %v1025 = vshll.u32 %v897, 16
        %v1027 = vrot.slane %v1025, 5
        %v1028 = vsel %vm293, %v1023, %v1027
        %v1030 = vshrl.u32 %v871, 16
        %v1032 = vrot.slane %v1030, 4
        %v1033 = vshll.u32 %v871, 16
        %v1035 = vrot.slane %v1033, 5
        %v1036 = vor.u32 %v1032, %v1035
        %v1037 = vrot.slane %v1036, 4
        %v1039 = vshll.u32 %v872, 16
        %v1041 = vrot.slane %v1039, 5
        %v1042 = vsel %vm293, %v1037, %v1041
        %v1043 = vshrl.u32 %v872, 16
        %v1045 = vrot.slane %v1043, 4
        %v1046 = vor.u32 %v1045, %v1041
        %v1047 = vrot.slane %v1046, 4
        %v1049 = vshll.u32 %v898, 16
        %v1051 = vrot.slane %v1049, 5
        %v1052 = vsel %vm293, %v1047, %v1051
        %v1054 = vshrl.u32 %v873, 16
        %v1056 = vrot.slane %v1054, 4
        %v1057 = vshll.u32 %v873, 16
        %v1059 = vrot.slane %v1057, 5
        %v1060 = vor.u32 %v1056, %v1059
        %v1061 = vrot.slane %v1060, 4
        %v1063 = vshll.u32 %v874, 16
        %v1065 = vrot.slane %v1063, 5
        %v1066 = vsel %vm293, %v1061, %v1065
        %v1067 = vshrl.u32 %v874, 16
        %v1069 = vrot.slane %v1067, 4
        %v1070 = vor.u32 %v1069, %v1065
        %v1071 = vrot.slane %v1070, 4
        %v1073 = vshll.u32 %v899, 16
        %v1075 = vrot.slane %v1073, 5
        %v1076 = vsel %vm293, %v1071, %v1075
        %v1078 = vshrl.u32 %v875, 16
        %v1080 = vrot.slane %v1078, 4
        %v1081 = vshll.u32 %v875, 16
        %v1083 = vrot.slane %v1081, 5
        %v1084 = vor.u32 %v1080, %v1083
        %v1085 = vrot.slane %v1084, 4
        %v1087 = vshll.u32 %v876, 16
        %v1089 = vrot.slane %v1087, 5
        %v1090 = vsel %vm293, %v1085, %v1089
        %v1091 = vshrl.u32 %v876, 16
        %v1093 = vrot.slane %v1091, 4
        %v1094 = vor.u32 %v1093, %v1089
        %v1095 = vrot.slane %v1094, 4
        %v1097 = vshll.u32 %v900, 16
        %v1099 = vrot.slane %v1097, 5
        %v1100 = vsel %vm293, %v1095, %v1099
        %v1102 = vshrl.u32 %v877, 16
        %v1104 = vrot.slane %v1102, 4
        %v1105 = vshll.u32 %v877, 16
        %v1107 = vrot.slane %v1105, 5
        %v1108 = vor.u32 %v1104, %v1107
        %v1109 = vrot.slane %v1108, 4
        %v1111 = vshll.u32 %v878, 16
        %v1113 = vrot.slane %v1111, 5
        %v1114 = vsel %vm293, %v1109, %v1113
        %v1115 = vshrl.u32 %v878, 16
        %v1117 = vrot.slane %v1115, 4
        %v1118 = vor.u32 %v1117, %v1113
        %v1119 = vrot.slane %v1118, 4
        %v1121 = vshll.u32 %v901, 16
        %v1123 = vrot.slane %v1121, 5
        %v1124 = vsel %vm293, %v1119, %v1123
        %v1126 = vshrl.u32 %v879, 16
        %v1128 = vrot.slane %v1126, 4
        %v1129 = vshll.u32 %v879, 16
        %v1131 = vrot.slane %v1129, 5
        %v1132 = vor.u32 %v1128, %v1131
        %v1133 = vrot.slane %v1132, 4
        %v1135 = vshll.u32 %v880, 16
        %v1137 = vrot.slane %v1135, 5
        %v1138 = vsel %vm293, %v1133, %v1137
        %v1139 = vshrl.u32 %v880, 16
        %v1141 = vrot.slane %v1139, 4
        %v1142 = vor.u32 %v1141, %v1137
        %v1143 = vrot.slane %v1142, 4
        %v1145 = vshll.u32 %v902, 16
        %v1147 = vrot.slane %v1145, 5
        %v1148 = vsel %vm293, %v1143, %v1147
        %v1150 = vshrl.u32 %v881, 16
        %v1152 = vrot.slane %v1150, 4
        %v1153 = vshll.u32 %v881, 16
        %v1155 = vrot.slane %v1153, 5
        %v1156 = vor.u32 %v1152, %v1155
        %v1157 = vrot.slane %v1156, 4
        %v1159 = vshll.u32 %v882, 16
        %v1161 = vrot.slane %v1159, 5
        %v1162 = vsel %vm293, %v1157, %v1161
        %v1163 = vshrl.u32 %v882, 16
        %v1165 = vrot.slane %v1163, 4
        %v1166 = vor.u32 %v1165, %v1161
        %v1167 = vrot.slane %v1166, 4
        %v1169 = vshll.u32 %v903, 16
        %v1171 = vrot.slane %v1169, 5
        %v1172 = vsel %vm293, %v1167, %v1171
        %v1174 = vshrl.u32 %v883, 16
        %v1176 = vrot.slane %v1174, 4
        %v1177 = vshll.u32 %v883, 16
        %v1179 = vrot.slane %v1177, 5
        %v1180 = vor.u32 %v1176, %v1179
        %v1181 = vrot.slane %v1180, 4
        %v1183 = vshll.u32 %v884, 16
        %v1185 = vrot.slane %v1183, 5
        %v1186 = vsel %vm293, %v1181, %v1185
        %v1187 = vshrl.u32 %v884, 16
        %v1189 = vrot.slane %v1187, 4
        %v1190 = vor.u32 %v1189, %v1185
        %v1191 = vrot.slane %v1190, 4
        %v1193 = vshll.u32 %v904, 16
        %v1195 = vrot.slane %v1193, 5
        %v1196 = vsel %vm293, %v1191, %v1195
        %v1198 = vshrl.u32 %v885, 16
        %v1200 = vrot.slane %v1198, 4
        %v1201 = vshll.u32 %v885, 16
        %v1203 = vrot.slane %v1201, 5
        %v1204 = vor.u32 %v1200, %v1203
        %v1205 = vrot.slane %v1204, 4
        %v1207 = vshll.u32 %v886, 16
        %v1209 = vrot.slane %v1207, 5
        %v1210 = vsel %vm293, %v1205, %v1209
        %v1211 = vshrl.u32 %v886, 16
        %v1213 = vrot.slane %v1211, 4
        %v1214 = vor.u32 %v1213, %v1209
        %v1215 = vrot.slane %v1214, 4
        %v1217 = vshll.u32 %v905, 16
        %v1219 = vrot.slane %v1217, 5
        %v1220 = vsel %vm293, %v1215, %v1219
        %v1222 = vshrl.u32 %v887, 16
        %v1224 = vrot.slane %v1222, 4
        %v1225 = vshll.u32 %v887, 16
        %v1227 = vrot.slane %v1225, 5
        %v1228 = vor.u32 %v1224, %v1227
        %v1229 = vrot.slane %v1228, 4
        %v1231 = vshll.u32 %v888, 16
        %v1233 = vrot.slane %v1231, 5
        %v1234 = vsel %vm293, %v1229, %v1233
        %v1235 = vshrl.u32 %v888, 16
        %v1237 = vrot.slane %v1235, 4
        %v1238 = vor.u32 %v1237, %v1233
        %v1239 = vrot.slane %v1238, 4
        %v1241 = vshll.u32 %v906, 16
        %v1243 = vrot.slane %v1241, 5
        %v1244 = vsel %vm293, %v1239, %v1243
        %v1246 = vshrl.u32 %v889, 16
        %v1248 = vrot.slane %v1246, 4
        %v1249 = vshll.u32 %v889, 16
        %v1251 = vrot.slane %v1249, 5
        %v1252 = vor.u32 %v1248, %v1251
        %v1253 = vrot.slane %v1252, 4
        %v1255 = vshll.u32 %v890, 16
        %v1257 = vrot.slane %v1255, 5
        %v1258 = vsel %vm293, %v1253, %v1257
        %v1259 = vshrl.u32 %v890, 16
        %v1261 = vrot.slane %v1259, 4
        %v1262 = vor.u32 %v1261, %v1257
        %v1263 = vrot.slane %v1262, 4
        %v1265 = vshll.u32 %v907, 16
        %v1267 = vrot.slane %v1265, 5
        %v1268 = vsel %vm293, %v1263, %v1267
        %v1270 = vshrl.u32 %v891, 16
        %v1272 = vrot.slane %v1270, 4
        %v1273 = vshll.u32 %v891, 16
        %v1275 = vrot.slane %v1273, 5
        %v1276 = vor.u32 %v1272, %v1275
        %v1277 = vrot.slane %v1276, 4
        %v1279 = vshll.u32 %v892, 16
        %v1281 = vrot.slane %v1279, 5
        %v1282 = vsel %vm293, %v1277, %v1281
        %v1283 = vshrl.u32 %v892, 16
        %v1285 = vrot.slane %v1283, 4
        %v1286 = vor.u32 %v1285, %v1281
        %v1287 = vrot.slane %v1286, 4
        %v1289 = vshll.u32 %v908, 16
        %v1291 = vrot.slane %v1289, 5
        %v1292 = vsel %vm293, %v1287, %v1291
        %v1293 = vld [vmem:[%s860] sm:$0xe]
        %v1294 = vld [vmem:[%s860 + $0xc] sm:$0xe]
        %v1295 = vld [vmem:[%s860 + $0x18] sm:$0xe]
        %v1296 = vld [vmem:[%s860 + $0x24] sm:$0xe]
        %v1297 = vld [vmem:[%s860 + $0x30] sm:$0xe]
        %v1298 = vld [vmem:[%s860 + $0x3c] sm:$0xe]
        %v1299 = vld [vmem:[%s860 + $0x48] sm:$0xe]
        %v1300 = vld [vmem:[%s860 + $0x54] sm:$0xe]
        %v1301 = vld [vmem:[%s860 + $0x60] sm:$0xe]
        %v1302 = vld [vmem:[%s860 + $0x6c] sm:$0xe]
        %v1303 = vld [vmem:[%s860 + $0x78] sm:$0xe]
        %v1304 = vld [vmem:[%s860 + $0x84] sm:$0xe]
        %v1305 = vld [vmem:[%s860 + $0x90] sm:$0xe]
        %v1306 = vld [vmem:[%s860 + $0x9c] sm:$0xe]
        %v1307 = vld [vmem:[%s860 + $0xa8] sm:$0xe]
        %v1308 = vld [vmem:[%s860 + $0xb4] sm:$0xe]
        %v1357 = vrot.slane %v1293, 5
        %v1358 = vrot.slane %v1357, 4
        %v1359 = vrot.slane %v862, 5
        %v1360 = vsel %vm744, %v1358, %v1359
        %v1361 = vrot.slane %v1359, 4
        %v1362 = vrot.slane %v893, 5
        %v1363 = vsel %vm744, %v1361, %v1362
        %v1364 = vrot.slane %v1294, 5
        %v1365 = vrot.slane %v1364, 4
        %v1366 = vrot.slane %v864, 5
        %v1367 = vsel %vm744, %v1365, %v1366
        %v1368 = vrot.slane %v1366, 4
        %v1369 = vrot.slane %v894, 5
        %v1370 = vsel %vm744, %v1368, %v1369
        %v1371 = vrot.slane %v1295, 5
        %v1372 = vrot.slane %v1371, 4
        %v1373 = vrot.slane %v866, 5
        %v1374 = vsel %vm744, %v1372, %v1373
        %v1375 = vrot.slane %v1373, 4
        %v1376 = vrot.slane %v895, 5
        %v1377 = vsel %vm744, %v1375, %v1376
        %v1378 = vrot.slane %v1296, 5
        %v1379 = vrot.slane %v1378, 4
        %v1380 = vrot.slane %v868, 5
        %v1381 = vsel %vm744, %v1379, %v1380
        %v1382 = vrot.slane %v1380, 4
        %v1383 = vrot.slane %v896, 5
        %v1384 = vsel %vm744, %v1382, %v1383
        %v1385 = vrot.slane %v1297, 5
        %v1386 = vrot.slane %v1385, 4
        %v1387 = vrot.slane %v870, 5
        %v1388 = vsel %vm744, %v1386, %v1387
        %v1389 = vrot.slane %v1387, 4
        %v1390 = vrot.slane %v897, 5
        %v1391 = vsel %vm744, %v1389, %v1390
        %v1392 = vrot.slane %v1298, 5
        %v1393 = vrot.slane %v1392, 4
        %v1394 = vrot.slane %v872, 5
        %v1395 = vsel %vm744, %v1393, %v1394
        %v1396 = vrot.slane %v1394, 4
        %v1397 = vrot.slane %v898, 5
        %v1398 = vsel %vm744, %v1396, %v1397
        %v1399 = vrot.slane %v1299, 5
        %v1400 = vrot.slane %v1399, 4
        %v1401 = vrot.slane %v874, 5
        %v1402 = vsel %vm744, %v1400, %v1401
        %v1403 = vrot.slane %v1401, 4
        %v1404 = vrot.slane %v899, 5
        %v1405 = vsel %vm744, %v1403, %v1404
        %v1406 = vrot.slane %v1300, 5
        %v1407 = vrot.slane %v1406, 4
        %v1408 = vrot.slane %v876, 5
        %v1409 = vsel %vm744, %v1407, %v1408
        %v1410 = vrot.slane %v1408, 4
        %v1411 = vrot.slane %v900, 5
        %v1412 = vsel %vm744, %v1410, %v1411
        %v1413 = vrot.slane %v1301, 5
        %v1414 = vrot.slane %v1413, 4
        %v1415 = vrot.slane %v878, 5
        %v1416 = vsel %vm744, %v1414, %v1415
        %v1417 = vrot.slane %v1415, 4
        %v1418 = vrot.slane %v901, 5
        %v1419 = vsel %vm744, %v1417, %v1418
        %v1420 = vrot.slane %v1302, 5
        %v1421 = vrot.slane %v1420, 4
        %v1422 = vrot.slane %v880, 5
        %v1423 = vsel %vm744, %v1421, %v1422
        %v1424 = vrot.slane %v1422, 4
        %v1425 = vrot.slane %v902, 5
        %v1426 = vsel %vm744, %v1424, %v1425
        %v1427 = vrot.slane %v1303, 5
        %v1428 = vrot.slane %v1427, 4
        %v1429 = vrot.slane %v882, 5
        %v1430 = vsel %vm744, %v1428, %v1429
        %v1431 = vrot.slane %v1429, 4
        %v1432 = vrot.slane %v903, 5
        %v1433 = vsel %vm744, %v1431, %v1432
        %v1434 = vrot.slane %v1304, 5
        %v1435 = vrot.slane %v1434, 4
        %v1436 = vrot.slane %v884, 5
        %v1437 = vsel %vm744, %v1435, %v1436
        %v1438 = vrot.slane %v1436, 4
        %v1439 = vrot.slane %v904, 5
        %v1440 = vsel %vm744, %v1438, %v1439
        %v1441 = vrot.slane %v1305, 5
        %v1442 = vrot.slane %v1441, 4
        %v1443 = vrot.slane %v886, 5
        %v1444 = vsel %vm744, %v1442, %v1443
        %v1445 = vrot.slane %v1443, 4
        %v1446 = vrot.slane %v905, 5
        %v1447 = vsel %vm744, %v1445, %v1446
        %v1448 = vrot.slane %v1306, 5
        %v1449 = vrot.slane %v1448, 4
        %v1450 = vrot.slane %v888, 5
        %v1451 = vsel %vm744, %v1449, %v1450
        %v1452 = vrot.slane %v1450, 4
        %v1453 = vrot.slane %v906, 5
        %v1454 = vsel %vm744, %v1452, %v1453
        %v1455 = vrot.slane %v1307, 5
        %v1456 = vrot.slane %v1455, 4
        %v1457 = vrot.slane %v890, 5
        %v1458 = vsel %vm744, %v1456, %v1457
        %v1459 = vrot.slane %v1457, 4
        %v1460 = vrot.slane %v907, 5
        %v1461 = vsel %vm744, %v1459, %v1460
        %v1462 = vrot.slane %v1308, 5
        %v1463 = vrot.slane %v1462, 4
        %v1464 = vrot.slane %v892, 5
        %v1465 = vsel %vm744, %v1463, %v1464
        %v1466 = vrot.slane %v1464, 4
        %v1467 = vrot.slane %v908, 5
        %v1468 = vsel %vm744, %v1466, %v1467
        %s1469 = sadd.s32 %s232, 2
        %s1470 = smul.u32 %s1469, 3
        %s1471 = smul.addr %s1470, 4
        %s1472 = scalar_lea.vmem %s199, %s1471 [#allocation2]
        %v1473 = vld [vmem:[%s1472] sm:$0xf]
        %v1474 = vld [vmem:[%s1472 + $0x4] sm:$0xf]
        %v1475 = vld [vmem:[%s1472 + $0xc] sm:$0xf]
        %v1476 = vld [vmem:[%s1472 + $0x10] sm:$0xf]
        %v1477 = vld [vmem:[%s1472 + $0x18] sm:$0xf]
        %v1478 = vld [vmem:[%s1472 + $0x1c] sm:$0xf]
        %v1479 = vld [vmem:[%s1472 + $0x24] sm:$0xf]
        %v1480 = vld [vmem:[%s1472 + $0x28] sm:$0xf]
        %v1481 = vld [vmem:[%s1472 + $0x30] sm:$0xf]
        %v1482 = vld [vmem:[%s1472 + $0x34] sm:$0xf]
        %v1483 = vld [vmem:[%s1472 + $0x3c] sm:$0xf]
        %v1484 = vld [vmem:[%s1472 + $0x40] sm:$0xf]
        %v1485 = vld [vmem:[%s1472 + $0x48] sm:$0xf]
        %v1486 = vld [vmem:[%s1472 + $0x4c] sm:$0xf]
        %v1487 = vld [vmem:[%s1472 + $0x54] sm:$0xf]
        %v1488 = vld [vmem:[%s1472 + $0x58] sm:$0xf]
        %v1489 = vld [vmem:[%s1472 + $0x60] sm:$0xf]
        %v1490 = vld [vmem:[%s1472 + $0x64] sm:$0xf]
        %v1491 = vld [vmem:[%s1472 + $0x6c] sm:$0xf]
        %v1492 = vld [vmem:[%s1472 + $0x70] sm:$0xf]
        %v1493 = vld [vmem:[%s1472 + $0x78] sm:$0xf]
        %v1494 = vld [vmem:[%s1472 + $0x7c] sm:$0xf]
        %v1495 = vld [vmem:[%s1472 + $0x84] sm:$0xf]
        %v1496 = vld [vmem:[%s1472 + $0x88] sm:$0xf]
        %v1497 = vld [vmem:[%s1472 + $0x90] sm:$0xf]
        %v1498 = vld [vmem:[%s1472 + $0x94] sm:$0xf]
        %v1499 = vld [vmem:[%s1472 + $0x9c] sm:$0xf]
        %v1500 = vld [vmem:[%s1472 + $0xa0] sm:$0xf]
        %v1501 = vld [vmem:[%s1472 + $0xa8] sm:$0xf]
        %v1502 = vld [vmem:[%s1472 + $0xac] sm:$0xf]
        %v1503 = vld [vmem:[%s1472 + $0xb4] sm:$0xf]
        %v1504 = vld [vmem:[%s1472 + $0xb8] sm:$0xf]
        %v1505 = vld [vmem:[%s1472 + $0x8] sm:$0x1]
        %v1506 = vld [vmem:[%s1472 + $0x14] sm:$0x1]
        %v1507 = vld [vmem:[%s1472 + $0x20] sm:$0x1]
        %v1508 = vld [vmem:[%s1472 + $0x2c] sm:$0x1]
        %v1509 = vld [vmem:[%s1472 + $0x38] sm:$0x1]
        %v1510 = vld [vmem:[%s1472 + $0x44] sm:$0x1]
        %v1511 = vld [vmem:[%s1472 + $0x50] sm:$0x1]
        %v1512 = vld [vmem:[%s1472 + $0x5c] sm:$0x1]
        %v1513 = vld [vmem:[%s1472 + $0x68] sm:$0x1]
        %v1514 = vld [vmem:[%s1472 + $0x74] sm:$0x1]
        %v1515 = vld [vmem:[%s1472 + $0x80] sm:$0x1]
        %v1516 = vld [vmem:[%s1472 + $0x8c] sm:$0x1]
        %v1517 = vld [vmem:[%s1472 + $0x98] sm:$0x1]
        %v1518 = vld [vmem:[%s1472 + $0xa4] sm:$0x1]
        %v1519 = vld [vmem:[%s1472 + $0xb0] sm:$0x1]
        %v1520 = vld [vmem:[%s1472 + $0xbc] sm:$0x1]
        %v1522 = vshrl.u32 %v1473, 16
        %v1524 = vrot.slane %v1522, 4
        %v1525 = vshll.u32 %v1473, 16
        %v1527 = vrot.slane %v1525, 5
        %v1528 = vor.u32 %v1524, %v1527
        %v1529 = vrot.slane %v1528, 4
        %v1531 = vshll.u32 %v1474, 16
        %v1533 = vrot.slane %v1531, 5
        %v1534 = vsel %vm293, %v1529, %v1533
        %v1535 = vshrl.u32 %v1474, 16
        %v1537 = vrot.slane %v1535, 4
        %v1538 = vor.u32 %v1537, %v1533
        %v1539 = vrot.slane %v1538, 4
        %v1541 = vshll.u32 %v1505, 16
        %v1543 = vrot.slane %v1541, 5
        %v1544 = vsel %vm293, %v1539, %v1543
        %v1546 = vshrl.u32 %v1475, 16
        %v1548 = vrot.slane %v1546, 4
        %v1549 = vshll.u32 %v1475, 16
        %v1551 = vrot.slane %v1549, 5
        %v1552 = vor.u32 %v1548, %v1551
        %v1553 = vrot.slane %v1552, 4
        %v1555 = vshll.u32 %v1476, 16
        %v1557 = vrot.slane %v1555, 5
        %v1558 = vsel %vm293, %v1553, %v1557
        %v1559 = vshrl.u32 %v1476, 16
        %v1561 = vrot.slane %v1559, 4
        %v1562 = vor.u32 %v1561, %v1557
        %v1563 = vrot.slane %v1562, 4
        %v1565 = vshll.u32 %v1506, 16
        %v1567 = vrot.slane %v1565, 5
        %v1568 = vsel %vm293, %v1563, %v1567
        %v1570 = vshrl.u32 %v1477, 16
        %v1572 = vrot.slane %v1570, 4
        %v1573 = vshll.u32 %v1477, 16
        %v1575 = vrot.slane %v1573, 5
        %v1576 = vor.u32 %v1572, %v1575
        %v1577 = vrot.slane %v1576, 4
        %v1579 = vshll.u32 %v1478, 16
        %v1581 = vrot.slane %v1579, 5
        %v1582 = vsel %vm293, %v1577, %v1581
        %v1583 = vshrl.u32 %v1478, 16
        %v1585 = vrot.slane %v1583, 4
        %v1586 = vor.u32 %v1585, %v1581
        %v1587 = vrot.slane %v1586, 4
        %v1589 = vshll.u32 %v1507, 16
        %v1591 = vrot.slane %v1589, 5
        %v1592 = vsel %vm293, %v1587, %v1591
        %v1594 = vshrl.u32 %v1479, 16
        %v1596 = vrot.slane %v1594, 4
        %v1597 = vshll.u32 %v1479, 16
        %v1599 = vrot.slane %v1597, 5
        %v1600 = vor.u32 %v1596, %v1599
        %v1601 = vrot.slane %v1600, 4
        %v1603 = vshll.u32 %v1480, 16
        %v1605 = vrot.slane %v1603, 5
        %v1606 = vsel %vm293, %v1601, %v1605
        %v1607 = vshrl.u32 %v1480, 16
        %v1609 = vrot.slane %v1607, 4
        %v1610 = vor.u32 %v1609, %v1605
        %v1611 = vrot.slane %v1610, 4
        %v1613 = vshll.u32 %v1508, 16
        %v1615 = vrot.slane %v1613, 5
        %v1616 = vsel %vm293, %v1611, %v1615
        %v1618 = vshrl.u32 %v1481, 16
        %v1620 = vrot.slane %v1618, 4
        %v1621 = vshll.u32 %v1481, 16
        %v1623 = vrot.slane %v1621, 5
        %v1624 = vor.u32 %v1620, %v1623
        %v1625 = vrot.slane %v1624, 4
        %v1627 = vshll.u32 %v1482, 16
        %v1629 = vrot.slane %v1627, 5
        %v1630 = vsel %vm293, %v1625, %v1629
        %v1631 = vshrl.u32 %v1482, 16
        %v1633 = vrot.slane %v1631, 4
        %v1634 = vor.u32 %v1633, %v1629
        %v1635 = vrot.slane %v1634, 4
        %v1637 = vshll.u32 %v1509, 16
        %v1639 = vrot.slane %v1637, 5
        %v1640 = vsel %vm293, %v1635, %v1639
        %v1642 = vshrl.u32 %v1483, 16
        %v1644 = vrot.slane %v1642, 4
        %v1645 = vshll.u32 %v1483, 16
        %v1647 = vrot.slane %v1645, 5
        %v1648 = vor.u32 %v1644, %v1647
        %v1649 = vrot.slane %v1648, 4
        %v1651 = vshll.u32 %v1484, 16
        %v1653 = vrot.slane %v1651, 5
        %v1654 = vsel %vm293, %v1649, %v1653
        %v1655 = vshrl.u32 %v1484, 16
        %v1657 = vrot.slane %v1655, 4
        %v1658 = vor.u32 %v1657, %v1653
        %v1659 = vrot.slane %v1658, 4
        %v1661 = vshll.u32 %v1510, 16
        %v1663 = vrot.slane %v1661, 5
        %v1664 = vsel %vm293, %v1659, %v1663
        %v1666 = vshrl.u32 %v1485, 16
        %v1668 = vrot.slane %v1666, 4
        %v1669 = vshll.u32 %v1485, 16
        %v1671 = vrot.slane %v1669, 5
        %v1672 = vor.u32 %v1668, %v1671
        %v1673 = vrot.slane %v1672, 4
        %v1675 = vshll.u32 %v1486, 16
        %v1677 = vrot.slane %v1675, 5
        %v1678 = vsel %vm293, %v1673, %v1677
        %v1679 = vshrl.u32 %v1486, 16
        %v1681 = vrot.slane %v1679, 4
        %v1682 = vor.u32 %v1681, %v1677
        %v1683 = vrot.slane %v1682, 4
        %v1685 = vshll.u32 %v1511, 16
        %v1687 = vrot.slane %v1685, 5
        %v1688 = vsel %vm293, %v1683, %v1687
        %v1690 = vshrl.u32 %v1487, 16
        %v1692 = vrot.slane %v1690, 4
        %v1693 = vshll.u32 %v1487, 16
        %v1695 = vrot.slane %v1693, 5
        %v1696 = vor.u32 %v1692, %v1695
        %v1697 = vrot.slane %v1696, 4
        %v1699 = vshll.u32 %v1488, 16
        %v1701 = vrot.slane %v1699, 5
        %v1702 = vsel %vm293, %v1697, %v1701
        %v1703 = vshrl.u32 %v1488, 16
        %v1705 = vrot.slane %v1703, 4
        %v1706 = vor.u32 %v1705, %v1701
        %v1707 = vrot.slane %v1706, 4
        %v1709 = vshll.u32 %v1512, 16
        %v1711 = vrot.slane %v1709, 5
        %v1712 = vsel %vm293, %v1707, %v1711
        %v1714 = vshrl.u32 %v1489, 16
        %v1716 = vrot.slane %v1714, 4
        %v1717 = vshll.u32 %v1489, 16
        %v1719 = vrot.slane %v1717, 5
        %v1720 = vor.u32 %v1716, %v1719
        %v1721 = vrot.slane %v1720, 4
        %v1723 = vshll.u32 %v1490, 16
        %v1725 = vrot.slane %v1723, 5
        %v1726 = vsel %vm293, %v1721, %v1725
        %v1727 = vshrl.u32 %v1490, 16
        %v1729 = vrot.slane %v1727, 4
        %v1730 = vor.u32 %v1729, %v1725
        %v1731 = vrot.slane %v1730, 4
        %v1733 = vshll.u32 %v1513, 16
        %v1735 = vrot.slane %v1733, 5
        %v1736 = vsel %vm293, %v1731, %v1735
        %v1738 = vshrl.u32 %v1491, 16
        %v1740 = vrot.slane %v1738, 4
        %v1741 = vshll.u32 %v1491, 16
        %v1743 = vrot.slane %v1741, 5
        %v1744 = vor.u32 %v1740, %v1743
        %v1745 = vrot.slane %v1744, 4
        %v1747 = vshll.u32 %v1492, 16
        %v1749 = vrot.slane %v1747, 5
        %v1750 = vsel %vm293, %v1745, %v1749
        %v1751 = vshrl.u32 %v1492, 16
        %v1753 = vrot.slane %v1751, 4
        %v1754 = vor.u32 %v1753, %v1749
        %v1755 = vrot.slane %v1754, 4
        %v1757 = vshll.u32 %v1514, 16
        %v1759 = vrot.slane %v1757, 5
        %v1760 = vsel %vm293, %v1755, %v1759
        %v1762 = vshrl.u32 %v1493, 16
        %v1764 = vrot.slane %v1762, 4
        %v1765 = vshll.u32 %v1493, 16
        %v1767 = vrot.slane %v1765, 5
        %v1768 = vor.u32 %v1764, %v1767
        %v1769 = vrot.slane %v1768, 4
        %v1771 = vshll.u32 %v1494, 16
        %v1773 = vrot.slane %v1771, 5
        %v1774 = vsel %vm293, %v1769, %v1773
        %v1775 = vshrl.u32 %v1494, 16
        %v1777 = vrot.slane %v1775, 4
        %v1778 = vor.u32 %v1777, %v1773
        %v1779 = vrot.slane %v1778, 4
        %v1781 = vshll.u32 %v1515, 16
        %v1783 = vrot.slane %v1781, 5
        %v1784 = vsel %vm293, %v1779, %v1783
        %v1786 = vshrl.u32 %v1495, 16
        %v1788 = vrot.slane %v1786, 4
        %v1789 = vshll.u32 %v1495, 16
        %v1791 = vrot.slane %v1789, 5
        %v1792 = vor.u32 %v1788, %v1791
        %v1793 = vrot.slane %v1792, 4
        %v1795 = vshll.u32 %v1496, 16
        %v1797 = vrot.slane %v1795, 5
        %v1798 = vsel %vm293, %v1793, %v1797
        %v1799 = vshrl.u32 %v1496, 16
        %v1801 = vrot.slane %v1799, 4
        %v1802 = vor.u32 %v1801, %v1797
        %v1803 = vrot.slane %v1802, 4
        %v1805 = vshll.u32 %v1516, 16
        %v1807 = vrot.slane %v1805, 5
        %v1808 = vsel %vm293, %v1803, %v1807
        %v1810 = vshrl.u32 %v1497, 16
        %v1812 = vrot.slane %v1810, 4
        %v1813 = vshll.u32 %v1497, 16
        %v1815 = vrot.slane %v1813, 5
        %v1816 = vor.u32 %v1812, %v1815
        %v1817 = vrot.slane %v1816, 4
        %v1819 = vshll.u32 %v1498, 16
        %v1821 = vrot.slane %v1819, 5
        %v1822 = vsel %vm293, %v1817, %v1821
        %v1823 = vshrl.u32 %v1498, 16
        %v1825 = vrot.slane %v1823, 4
        %v1826 = vor.u32 %v1825, %v1821
        %v1827 = vrot.slane %v1826, 4
        %v1829 = vshll.u32 %v1517, 16
        %v1831 = vrot.slane %v1829, 5
        %v1832 = vsel %vm293, %v1827, %v1831
        %v1834 = vshrl.u32 %v1499, 16
        %v1836 = vrot.slane %v1834, 4
        %v1837 = vshll.u32 %v1499, 16
        %v1839 = vrot.slane %v1837, 5
        %v1840 = vor.u32 %v1836, %v1839
        %v1841 = vrot.slane %v1840, 4
        %v1843 = vshll.u32 %v1500, 16
        %v1845 = vrot.slane %v1843, 5
        %v1846 = vsel %vm293, %v1841, %v1845
        %v1847 = vshrl.u32 %v1500, 16
        %v1849 = vrot.slane %v1847, 4
        %v1850 = vor.u32 %v1849, %v1845
        %v1851 = vrot.slane %v1850, 4
        %v1853 = vshll.u32 %v1518, 16
        %v1855 = vrot.slane %v1853, 5
        %v1856 = vsel %vm293, %v1851, %v1855
        %v1858 = vshrl.u32 %v1501, 16
        %v1860 = vrot.slane %v1858, 4
        %v1861 = vshll.u32 %v1501, 16
        %v1863 = vrot.slane %v1861, 5
        %v1864 = vor.u32 %v1860, %v1863
        %v1865 = vrot.slane %v1864, 4
        %v1867 = vshll.u32 %v1502, 16
        %v1869 = vrot.slane %v1867, 5
        %v1870 = vsel %vm293, %v1865, %v1869
        %v1871 = vshrl.u32 %v1502, 16
        %v1873 = vrot.slane %v1871, 4
        %v1874 = vor.u32 %v1873, %v1869
        %v1875 = vrot.slane %v1874, 4
        %v1877 = vshll.u32 %v1519, 16
        %v1879 = vrot.slane %v1877, 5
        %v1880 = vsel %vm293, %v1875, %v1879
        %v1882 = vshrl.u32 %v1503, 16
        %v1884 = vrot.slane %v1882, 4
        %v1885 = vshll.u32 %v1503, 16
        %v1887 = vrot.slane %v1885, 5
        %v1888 = vor.u32 %v1884, %v1887
        %v1889 = vrot.slane %v1888, 4
        %v1891 = vshll.u32 %v1504, 16
        %v1893 = vrot.slane %v1891, 5
        %v1894 = vsel %vm293, %v1889, %v1893
        %v1895 = vshrl.u32 %v1504, 16
        %v1897 = vrot.slane %v1895, 4
        %v1898 = vor.u32 %v1897, %v1893
        %v1899 = vrot.slane %v1898, 4
        %v1901 = vshll.u32 %v1520, 16
        %v1903 = vrot.slane %v1901, 5
        %v1904 = vsel %vm293, %v1899, %v1903
        %v1905 = vld [vmem:[%s1472] sm:$0xe]
        %v1906 = vld [vmem:[%s1472 + $0xc] sm:$0xe]
        %v1907 = vld [vmem:[%s1472 + $0x18] sm:$0xe]
        %v1908 = vld [vmem:[%s1472 + $0x24] sm:$0xe]
        %v1909 = vld [vmem:[%s1472 + $0x30] sm:$0xe]
        %v1910 = vld [vmem:[%s1472 + $0x3c] sm:$0xe]
        %v1911 = vld [vmem:[%s1472 + $0x48] sm:$0xe]
        %v1912 = vld [vmem:[%s1472 + $0x54] sm:$0xe]
        %v1913 = vld [vmem:[%s1472 + $0x60] sm:$0xe]
        %v1914 = vld [vmem:[%s1472 + $0x6c] sm:$0xe]
        %v1915 = vld [vmem:[%s1472 + $0x78] sm:$0xe]
        %v1916 = vld [vmem:[%s1472 + $0x84] sm:$0xe]
        %v1917 = vld [vmem:[%s1472 + $0x90] sm:$0xe]
        %v1918 = vld [vmem:[%s1472 + $0x9c] sm:$0xe]
        %v1919 = vld [vmem:[%s1472 + $0xa8] sm:$0xe]
        %v1920 = vld [vmem:[%s1472 + $0xb4] sm:$0xe]
        %v1969 = vrot.slane %v1905, 5
        %v1970 = vrot.slane %v1969, 4
        %v1971 = vrot.slane %v1474, 5
        %v1972 = vsel %vm744, %v1970, %v1971
        %v1973 = vrot.slane %v1971, 4
        %v1974 = vrot.slane %v1505, 5
        %v1975 = vsel %vm744, %v1973, %v1974
        %v1976 = vrot.slane %v1906, 5
        %v1977 = vrot.slane %v1976, 4
        %v1978 = vrot.slane %v1476, 5
        %v1979 = vsel %vm744, %v1977, %v1978
        %v1980 = vrot.slane %v1978, 4
        %v1981 = vrot.slane %v1506, 5
        %v1982 = vsel %vm744, %v1980, %v1981
        %v1983 = vrot.slane %v1907, 5
        %v1984 = vrot.slane %v1983, 4
        %v1985 = vrot.slane %v1478, 5
        %v1986 = vsel %vm744, %v1984, %v1985
        %v1987 = vrot.slane %v1985, 4
        %v1988 = vrot.slane %v1507, 5
        %v1989 = vsel %vm744, %v1987, %v1988
        %v1990 = vrot.slane %v1908, 5
        %v1991 = vrot.slane %v1990, 4
        %v1992 = vrot.slane %v1480, 5
        %v1993 = vsel %vm744, %v1991, %v1992
        %v1994 = vrot.slane %v1992, 4
        %v1995 = vrot.slane %v1508, 5
        %v1996 = vsel %vm744, %v1994, %v1995
        %v1997 = vrot.slane %v1909, 5
        %v1998 = vrot.slane %v1997, 4
        %v1999 = vrot.slane %v1482, 5
        %v2000 = vsel %vm744, %v1998, %v1999
        %v2001 = vrot.slane %v1999, 4
        %v2002 = vrot.slane %v1509, 5
        %v2003 = vsel %vm744, %v2001, %v2002
        %v2004 = vrot.slane %v1910, 5
        %v2005 = vrot.slane %v2004, 4
        %v2006 = vrot.slane %v1484, 5
        %v2007 = vsel %vm744, %v2005, %v2006
        %v2008 = vrot.slane %v2006, 4
        %v2009 = vrot.slane %v1510, 5
        %v2010 = vsel %vm744, %v2008, %v2009
        %v2011 = vrot.slane %v1911, 5
        %v2012 = vrot.slane %v2011, 4
        %v2013 = vrot.slane %v1486, 5
        %v2014 = vsel %vm744, %v2012, %v2013
        %v2015 = vrot.slane %v2013, 4
        %v2016 = vrot.slane %v1511, 5
        %v2017 = vsel %vm744, %v2015, %v2016
        %v2018 = vrot.slane %v1912, 5
        %v2019 = vrot.slane %v2018, 4
        %v2020 = vrot.slane %v1488, 5
        %v2021 = vsel %vm744, %v2019, %v2020
        %v2022 = vrot.slane %v2020, 4
        %v2023 = vrot.slane %v1512, 5
        %v2024 = vsel %vm744, %v2022, %v2023
        %v2025 = vrot.slane %v1913, 5
        %v2026 = vrot.slane %v2025, 4
        %v2027 = vrot.slane %v1490, 5
        %v2028 = vsel %vm744, %v2026, %v2027
        %v2029 = vrot.slane %v2027, 4
        %v2030 = vrot.slane %v1513, 5
        %v2031 = vsel %vm744, %v2029, %v2030
        %v2032 = vrot.slane %v1914, 5
        %v2033 = vrot.slane %v2032, 4
        %v2034 = vrot.slane %v1492, 5
        %v2035 = vsel %vm744, %v2033, %v2034
        %v2036 = vrot.slane %v2034, 4
        %v2037 = vrot.slane %v1514, 5
        %v2038 = vsel %vm744, %v2036, %v2037
        %v2039 = vrot.slane %v1915, 5
        %v2040 = vrot.slane %v2039, 4
        %v2041 = vrot.slane %v1494, 5
        %v2042 = vsel %vm744, %v2040, %v2041
        %v2043 = vrot.slane %v2041, 4
        %v2044 = vrot.slane %v1515, 5
        %v2045 = vsel %vm744, %v2043, %v2044
        %v2046 = vrot.slane %v1916, 5
        %v2047 = vrot.slane %v2046, 4
        %v2048 = vrot.slane %v1496, 5
        %v2049 = vsel %vm744, %v2047, %v2048
        %v2050 = vrot.slane %v2048, 4
        %v2051 = vrot.slane %v1516, 5
        %v2052 = vsel %vm744, %v2050, %v2051
        %v2053 = vrot.slane %v1917, 5
        %v2054 = vrot.slane %v2053, 4
        %v2055 = vrot.slane %v1498, 5
        %v2056 = vsel %vm744, %v2054, %v2055
        %v2057 = vrot.slane %v2055, 4
        %v2058 = vrot.slane %v1517, 5
        %v2059 = vsel %vm744, %v2057, %v2058
        %v2060 = vrot.slane %v1918, 5
        %v2061 = vrot.slane %v2060, 4
        %v2062 = vrot.slane %v1500, 5
        %v2063 = vsel %vm744, %v2061, %v2062
        %v2064 = vrot.slane %v2062, 4
        %v2065 = vrot.slane %v1518, 5
        %v2066 = vsel %vm744, %v2064, %v2065
        %v2067 = vrot.slane %v1919, 5
        %v2068 = vrot.slane %v2067, 4
        %v2069 = vrot.slane %v1502, 5
        %v2070 = vsel %vm744, %v2068, %v2069
        %v2071 = vrot.slane %v2069, 4
        %v2072 = vrot.slane %v1519, 5
        %v2073 = vsel %vm744, %v2071, %v2072
        %v2074 = vrot.slane %v1920, 5
        %v2075 = vrot.slane %v2074, 4
        %v2076 = vrot.slane %v1504, 5
        %v2077 = vsel %vm744, %v2075, %v2076
        %v2078 = vrot.slane %v2076, 4
        %v2079 = vrot.slane %v1520, 5
        %v2080 = vsel %vm744, %v2078, %v2079
        %v2097 = vunpack.c.l.b16 %v243
        %v2098 = vunpack.c.l.b16 %v244
        %v2099 = vunpack.c.l.b16 %v245
        %v2100 = vunpack.c.l.b16 %v246
        %v2101 = vunpack.c.l.b16 %v247
        %v2102 = vunpack.c.l.b16 %v248
        %v2103 = vunpack.c.l.b16 %v249
        %v2104 = vunpack.c.l.b16 %v250
        %v2105 = vunpack.c.l.b16 %v251
        %v2106 = vunpack.c.l.b16 %v252
        %v2107 = vunpack.c.l.b16 %v253
        %v2108 = vunpack.c.l.b16 %v254
        %v2109 = vunpack.c.l.b16 %v255
        %v2110 = vunpack.c.l.b16 %v256
        %v2111 = vunpack.c.l.b16 %v257
        %v2112 = vunpack.c.l.b16 %v258
        %v2113 = vunpack.c.l.b16 %v259
        %v2114 = vunpack.c.l.b16 %v260
        %v2115 = vunpack.c.l.b16 %v261
        %v2116 = vunpack.c.l.b16 %v262
        %v2117 = vunpack.c.l.b16 %v263
        %v2118 = vunpack.c.l.b16 %v264
        %v2119 = vunpack.c.l.b16 %v265
        %v2120 = vunpack.c.l.b16 %v266
        %v2121 = vunpack.c.l.b16 %v267
        %v2122 = vunpack.c.l.b16 %v268
        %v2123 = vunpack.c.l.b16 %v269
        %v2124 = vunpack.c.l.b16 %v270
        %v2125 = vunpack.c.l.b16 %v271
        %v2126 = vunpack.c.l.b16 %v272
        %v2127 = vunpack.c.l.b16 %v273
        %v2128 = vunpack.c.l.b16 %v274
        %v2129 = vpack.c.b16 %v2098, %v2097
        %v2130 = vpack.c.b16 %v2100, %v2099
        %v2131 = vpack.c.b16 %v2102, %v2101
        %v2132 = vpack.c.b16 %v2104, %v2103
        %v2133 = vpack.c.b16 %v2106, %v2105
        %v2134 = vpack.c.b16 %v2108, %v2107
        %v2135 = vpack.c.b16 %v2110, %v2109
        %v2136 = vpack.c.b16 %v2112, %v2111
        %v2137 = vpack.c.b16 %v2114, %v2113
        %v2138 = vpack.c.b16 %v2116, %v2115
        %v2139 = vpack.c.b16 %v2118, %v2117
        %v2140 = vpack.c.b16 %v2120, %v2119
        %v2141 = vpack.c.b16 %v2122, %v2121
        %v2142 = vpack.c.b16 %v2124, %v2123
        %v2143 = vpack.c.b16 %v2126, %v2125
        %v2144 = vpack.c.b16 %v2128, %v2127
        %v2145 = vunpack.c.l.b16 %v307
        %v2146 = vunpack.c.l.b16 %v317
        %v2147 = vunpack.c.l.b16 %v331
        %v2148 = vunpack.c.l.b16 %v341
        %v2149 = vunpack.c.l.b16 %v355
        %v2150 = vunpack.c.l.b16 %v365
        %v2151 = vunpack.c.l.b16 %v379
        %v2152 = vunpack.c.l.b16 %v389
        %v2153 = vunpack.c.l.b16 %v403
        %v2154 = vunpack.c.l.b16 %v413
        %v2155 = vunpack.c.l.b16 %v427
        %v2156 = vunpack.c.l.b16 %v437
        %v2157 = vunpack.c.l.b16 %v451
        %v2158 = vunpack.c.l.b16 %v461
        %v2159 = vunpack.c.l.b16 %v475
        %v2160 = vunpack.c.l.b16 %v485
        %v2161 = vunpack.c.l.b16 %v499
        %v2162 = vunpack.c.l.b16 %v509
        %v2163 = vunpack.c.l.b16 %v523
        %v2164 = vunpack.c.l.b16 %v533
        %v2165 = vunpack.c.l.b16 %v547
        %v2166 = vunpack.c.l.b16 %v557
        %v2167 = vunpack.c.l.b16 %v571
        %v2168 = vunpack.c.l.b16 %v581
        %v2169 = vunpack.c.l.b16 %v595
        %v2170 = vunpack.c.l.b16 %v605
        %v2171 = vunpack.c.l.b16 %v619
        %v2172 = vunpack.c.l.b16 %v629
        %v2173 = vunpack.c.l.b16 %v643
        %v2174 = vunpack.c.l.b16 %v653
        %v2175 = vunpack.c.l.b16 %v667
        %v2176 = vunpack.c.l.b16 %v677
        %v2177 = vpack.c.b16 %v2146, %v2145
        %v2178 = vpack.c.b16 %v2148, %v2147
        %v2179 = vpack.c.b16 %v2150, %v2149
        %v2180 = vpack.c.b16 %v2152, %v2151
        %v2181 = vpack.c.b16 %v2154, %v2153
        %v2182 = vpack.c.b16 %v2156, %v2155
        %v2183 = vpack.c.b16 %v2158, %v2157
        %v2184 = vpack.c.b16 %v2160, %v2159
        %v2185 = vpack.c.b16 %v2162, %v2161
        %v2186 = vpack.c.b16 %v2164, %v2163
        %v2187 = vpack.c.b16 %v2166, %v2165
        %v2188 = vpack.c.b16 %v2168, %v2167
        %v2189 = vpack.c.b16 %v2170, %v2169
        %v2190 = vpack.c.b16 %v2172, %v2171
        %v2191 = vpack.c.b16 %v2174, %v2173
        %v2192 = vpack.c.b16 %v2176, %v2175
        %2193 = vrot.lane.b32.xlu0 %v2177, 4
        %v2194 = vpop.permute.xlu0 %2193
        %2195 = vrot.lane.b32.xlu0 %v2178, 4
        %v2196 = vpop.permute.xlu0 %2195
        %2197 = vrot.lane.b32.xlu0 %v2179, 4
        %v2198 = vpop.permute.xlu0 %2197
        %2199 = vrot.lane.b32.xlu0 %v2180, 4
        %v2200 = vpop.permute.xlu0 %2199
        %2201 = vrot.lane.b32.xlu0 %v2181, 4
        %v2202 = vpop.permute.xlu0 %2201
        %2203 = vrot.lane.b32.xlu0 %v2182, 4
        %v2204 = vpop.permute.xlu0 %2203
        %2205 = vrot.lane.b32.xlu0 %v2183, 4
        %v2206 = vpop.permute.xlu0 %2205
        %2207 = vrot.lane.b32.xlu0 %v2184, 4
        %v2208 = vpop.permute.xlu0 %2207
        %2209 = vrot.lane.b32.xlu0 %v2185, 4
        %v2210 = vpop.permute.xlu0 %2209
        %2211 = vrot.lane.b32.xlu0 %v2186, 4
        %v2212 = vpop.permute.xlu0 %2211
        %2213 = vrot.lane.b32.xlu0 %v2187, 4
        %v2214 = vpop.permute.xlu0 %2213
        %2215 = vrot.lane.b32.xlu0 %v2188, 4
        %v2216 = vpop.permute.xlu0 %2215
        %2217 = vrot.lane.b32.xlu0 %v2189, 4
        %v2218 = vpop.permute.xlu0 %2217
        %2219 = vrot.lane.b32.xlu0 %v2190, 4
        %v2220 = vpop.permute.xlu0 %2219
        %2221 = vrot.lane.b32.xlu0 %v2191, 4
        %v2222 = vpop.permute.xlu0 %2221
        %2223 = vrot.lane.b32.xlu0 %v2192, 4
        %v2224 = vpop.permute.xlu0 %2223
        %v2225 = vunpack.c.l.b16 %v748
        %v2226 = vunpack.c.l.b16 %v751
        %v2227 = vunpack.c.l.b16 %v755
        %v2228 = vunpack.c.l.b16 %v758
        %v2229 = vunpack.c.l.b16 %v762
        %v2230 = vunpack.c.l.b16 %v765
        %v2231 = vunpack.c.l.b16 %v769
        %v2232 = vunpack.c.l.b16 %v772
        %v2233 = vunpack.c.l.b16 %v776
        %v2234 = vunpack.c.l.b16 %v779
        %v2235 = vunpack.c.l.b16 %v783
        %v2236 = vunpack.c.l.b16 %v786
        %v2237 = vunpack.c.l.b16 %v790
        %v2238 = vunpack.c.l.b16 %v793
        %v2239 = vunpack.c.l.b16 %v797
        %v2240 = vunpack.c.l.b16 %v800
        %v2241 = vunpack.c.l.b16 %v804
        %v2242 = vunpack.c.l.b16 %v807
        %v2243 = vunpack.c.l.b16 %v811
        %v2244 = vunpack.c.l.b16 %v814
        %v2245 = vunpack.c.l.b16 %v818
        %v2246 = vunpack.c.l.b16 %v821
        %v2247 = vunpack.c.l.b16 %v825
        %v2248 = vunpack.c.l.b16 %v828
        %v2249 = vunpack.c.l.b16 %v832
        %v2250 = vunpack.c.l.b16 %v835
        %v2251 = vunpack.c.l.b16 %v839
        %v2252 = vunpack.c.l.b16 %v842
        %v2253 = vunpack.c.l.b16 %v846
        %v2254 = vunpack.c.l.b16 %v849
        %v2255 = vunpack.c.l.b16 %v853
        %v2256 = vunpack.c.l.b16 %v856
        %v2257 = vpack.c.b16 %v2226, %v2225
        %v2258 = vpack.c.b16 %v2228, %v2227
        %v2259 = vpack.c.b16 %v2230, %v2229
        %v2260 = vpack.c.b16 %v2232, %v2231
        %v2261 = vpack.c.b16 %v2234, %v2233
        %v2262 = vpack.c.b16 %v2236, %v2235
        %v2263 = vpack.c.b16 %v2238, %v2237
        %v2264 = vpack.c.b16 %v2240, %v2239
        %v2265 = vpack.c.b16 %v2242, %v2241
        %v2266 = vpack.c.b16 %v2244, %v2243
        %v2267 = vpack.c.b16 %v2246, %v2245
        %v2268 = vpack.c.b16 %v2248, %v2247
        %v2269 = vpack.c.b16 %v2250, %v2249
        %v2270 = vpack.c.b16 %v2252, %v2251
        %v2271 = vpack.c.b16 %v2254, %v2253
        %v2272 = vpack.c.b16 %v2256, %v2255
        %2273 = vrot.lane.b32.xlu0 %v2257, 8
        %v2274 = vpop.permute.xlu0 %2273
        %2275 = vrot.lane.b32.xlu0 %v2258, 8
        %v2276 = vpop.permute.xlu0 %2275
        %2277 = vrot.lane.b32.xlu0 %v2259, 8
        %v2278 = vpop.permute.xlu0 %2277
        %2279 = vrot.lane.b32.xlu0 %v2260, 8
        %v2280 = vpop.permute.xlu0 %2279
        %2281 = vrot.lane.b32.xlu0 %v2261, 8
        %v2282 = vpop.permute.xlu0 %2281
        %2283 = vrot.lane.b32.xlu0 %v2262, 8
        %v2284 = vpop.permute.xlu0 %2283
        %2285 = vrot.lane.b32.xlu0 %v2263, 8
        %v2286 = vpop.permute.xlu0 %2285
        %2287 = vrot.lane.b32.xlu0 %v2264, 8
        %v2288 = vpop.permute.xlu0 %2287
        %2289 = vrot.lane.b32.xlu0 %v2265, 8
        %v2290 = vpop.permute.xlu0 %2289
        %2291 = vrot.lane.b32.xlu0 %v2266, 8
        %v2292 = vpop.permute.xlu0 %2291
        %2293 = vrot.lane.b32.xlu0 %v2267, 8
        %v2294 = vpop.permute.xlu0 %2293
        %2295 = vrot.lane.b32.xlu0 %v2268, 8
        %v2296 = vpop.permute.xlu0 %2295
        %2297 = vrot.lane.b32.xlu0 %v2269, 8
        %v2298 = vpop.permute.xlu0 %2297
        %2299 = vrot.lane.b32.xlu0 %v2270, 8
        %v2300 = vpop.permute.xlu0 %2299
        %2301 = vrot.lane.b32.xlu0 %v2271, 8
        %v2302 = vpop.permute.xlu0 %2301
        %2303 = vrot.lane.b32.xlu0 %v2272, 8
        %v2304 = vpop.permute.xlu0 %2303
        %v2321 = vunpack.c.l.b16 %v861
        %v2322 = vunpack.c.l.b16 %v862
        %v2323 = vunpack.c.l.b16 %v863
        %v2324 = vunpack.c.l.b16 %v864
        %v2325 = vunpack.c.l.b16 %v865
        %v2326 = vunpack.c.l.b16 %v866
        %v2327 = vunpack.c.l.b16 %v867
        %v2328 = vunpack.c.l.b16 %v868
        %v2329 = vunpack.c.l.b16 %v869
        %v2330 = vunpack.c.l.b16 %v870
        %v2331 = vunpack.c.l.b16 %v871
        %v2332 = vunpack.c.l.b16 %v872
        %v2333 = vunpack.c.l.b16 %v873
        %v2334 = vunpack.c.l.b16 %v874
        %v2335 = vunpack.c.l.b16 %v875
        %v2336 = vunpack.c.l.b16 %v876
        %v2337 = vunpack.c.l.b16 %v877
        %v2338 = vunpack.c.l.b16 %v878
        %v2339 = vunpack.c.l.b16 %v879
        %v2340 = vunpack.c.l.b16 %v880
        %v2341 = vunpack.c.l.b16 %v881
        %v2342 = vunpack.c.l.b16 %v882
        %v2343 = vunpack.c.l.b16 %v883
        %v2344 = vunpack.c.l.b16 %v884
        %v2345 = vunpack.c.l.b16 %v885
        %v2346 = vunpack.c.l.b16 %v886
        %v2347 = vunpack.c.l.b16 %v887
        %v2348 = vunpack.c.l.b16 %v888
        %v2349 = vunpack.c.l.b16 %v889
        %v2350 = vunpack.c.l.b16 %v890
        %v2351 = vunpack.c.l.b16 %v891
        %v2352 = vunpack.c.l.b16 %v892
        %v2353 = vpack.c.b16 %v2322, %v2321
        %v2354 = vpack.c.b16 %v2324, %v2323
        %v2355 = vpack.c.b16 %v2326, %v2325
        %v2356 = vpack.c.b16 %v2328, %v2327
        %v2357 = vpack.c.b16 %v2330, %v2329
        %v2358 = vpack.c.b16 %v2332, %v2331
        %v2359 = vpack.c.b16 %v2334, %v2333
        %v2360 = vpack.c.b16 %v2336, %v2335
        %v2361 = vpack.c.b16 %v2338, %v2337
        %v2362 = vpack.c.b16 %v2340, %v2339
        %v2363 = vpack.c.b16 %v2342, %v2341
        %v2364 = vpack.c.b16 %v2344, %v2343
        %v2365 = vpack.c.b16 %v2346, %v2345
        %v2366 = vpack.c.b16 %v2348, %v2347
        %v2367 = vpack.c.b16 %v2350, %v2349
        %v2368 = vpack.c.b16 %v2352, %v2351
        %2369 = vrot.lane.b32.xlu0 %v2353, 12
        %v2370 = vpop.permute.xlu0 %2369
        %2371 = vrot.lane.b32.xlu0 %v2354, 12
        %v2372 = vpop.permute.xlu0 %2371
        %2373 = vrot.lane.b32.xlu0 %v2355, 12
        %v2374 = vpop.permute.xlu0 %2373
        %2375 = vrot.lane.b32.xlu0 %v2356, 12
        %v2376 = vpop.permute.xlu0 %2375
        %2377 = vrot.lane.b32.xlu0 %v2357, 12
        %v2378 = vpop.permute.xlu0 %2377
        %2379 = vrot.lane.b32.xlu0 %v2358, 12
        %v2380 = vpop.permute.xlu0 %2379
        %2381 = vrot.lane.b32.xlu0 %v2359, 12
        %v2382 = vpop.permute.xlu0 %2381
        %2383 = vrot.lane.b32.xlu0 %v2360, 12
        %v2384 = vpop.permute.xlu0 %2383
        %2385 = vrot.lane.b32.xlu0 %v2361, 12
        %v2386 = vpop.permute.xlu0 %2385
        %2387 = vrot.lane.b32.xlu0 %v2362, 12
        %v2388 = vpop.permute.xlu0 %2387
        %2389 = vrot.lane.b32.xlu0 %v2363, 12
        %v2390 = vpop.permute.xlu0 %2389
        %2391 = vrot.lane.b32.xlu0 %v2364, 12
        %v2392 = vpop.permute.xlu0 %2391
        %2393 = vrot.lane.b32.xlu0 %v2365, 12
        %v2394 = vpop.permute.xlu0 %2393
        %2395 = vrot.lane.b32.xlu0 %v2366, 12
        %v2396 = vpop.permute.xlu0 %2395
        %2397 = vrot.lane.b32.xlu0 %v2367, 12
        %v2398 = vpop.permute.xlu0 %2397
        %2399 = vrot.lane.b32.xlu0 %v2368, 12
        %v2400 = vpop.permute.xlu0 %2399
        %v2401 = vunpack.c.l.b16 %v922
        %v2402 = vunpack.c.l.b16 %v932
        %v2403 = vunpack.c.l.b16 %v946
        %v2404 = vunpack.c.l.b16 %v956
        %v2405 = vunpack.c.l.b16 %v970
        %v2406 = vunpack.c.l.b16 %v980
        %v2407 = vunpack.c.l.b16 %v994
        %v2408 = vunpack.c.l.b16 %v1004
        %v2409 = vunpack.c.l.b16 %v1018
        %v2410 = vunpack.c.l.b16 %v1028
        %v2411 = vunpack.c.l.b16 %v1042
        %v2412 = vunpack.c.l.b16 %v1052
        %v2413 = vunpack.c.l.b16 %v1066
        %v2414 = vunpack.c.l.b16 %v1076
        %v2415 = vunpack.c.l.b16 %v1090
        %v2416 = vunpack.c.l.b16 %v1100
        %v2417 = vunpack.c.l.b16 %v1114
        %v2418 = vunpack.c.l.b16 %v1124
        %v2419 = vunpack.c.l.b16 %v1138
        %v2420 = vunpack.c.l.b16 %v1148
        %v2421 = vunpack.c.l.b16 %v1162
        %v2422 = vunpack.c.l.b16 %v1172
        %v2423 = vunpack.c.l.b16 %v1186
        %v2424 = vunpack.c.l.b16 %v1196
        %v2425 = vunpack.c.l.b16 %v1210
        %v2426 = vunpack.c.l.b16 %v1220
        %v2427 = vunpack.c.l.b16 %v1234
        %v2428 = vunpack.c.l.b16 %v1244
        %v2429 = vunpack.c.l.b16 %v1258
        %v2430 = vunpack.c.l.b16 %v1268
        %v2431 = vunpack.c.l.b16 %v1282
        %v2432 = vunpack.c.l.b16 %v1292
        %v2433 = vpack.c.b16 %v2402, %v2401
        %v2434 = vpack.c.b16 %v2404, %v2403
        %v2435 = vpack.c.b16 %v2406, %v2405
        %v2436 = vpack.c.b16 %v2408, %v2407
        %v2437 = vpack.c.b16 %v2410, %v2409
        %v2438 = vpack.c.b16 %v2412, %v2411
        %v2439 = vpack.c.b16 %v2414, %v2413
        %v2440 = vpack.c.b16 %v2416, %v2415
        %v2441 = vpack.c.b16 %v2418, %v2417
        %v2442 = vpack.c.b16 %v2420, %v2419
        %v2443 = vpack.c.b16 %v2422, %v2421
        %v2444 = vpack.c.b16 %v2424, %v2423
        %v2445 = vpack.c.b16 %v2426, %v2425
        %v2446 = vpack.c.b16 %v2428, %v2427
        %v2447 = vpack.c.b16 %v2430, %v2429
        %v2448 = vpack.c.b16 %v2432, %v2431
        %2449 = vrot.lane.b32.xlu0 %v2433, 16
        %v2450 = vpop.permute.xlu0 %2449
        %2451 = vrot.lane.b32.xlu0 %v2434, 16
        %v2452 = vpop.permute.xlu0 %2451
        %2453 = vrot.lane.b32.xlu0 %v2435, 16
        %v2454 = vpop.permute.xlu0 %2453
        %2455 = vrot.lane.b32.xlu0 %v2436, 16
        %v2456 = vpop.permute.xlu0 %2455
        %2457 = vrot.lane.b32.xlu0 %v2437, 16
        %v2458 = vpop.permute.xlu0 %2457
        %2459 = vrot.lane.b32.xlu0 %v2438, 16
        %v2460 = vpop.permute.xlu0 %2459
        %2461 = vrot.lane.b32.xlu0 %v2439, 16
        %v2462 = vpop.permute.xlu0 %2461
        %2463 = vrot.lane.b32.xlu0 %v2440, 16
        %v2464 = vpop.permute.xlu0 %2463
        %2465 = vrot.lane.b32.xlu0 %v2441, 16
        %v2466 = vpop.permute.xlu0 %2465
        %2467 = vrot.lane.b32.xlu0 %v2442, 16
        %v2468 = vpop.permute.xlu0 %2467
        %2469 = vrot.lane.b32.xlu0 %v2443, 16
        %v2470 = vpop.permute.xlu0 %2469
        %2471 = vrot.lane.b32.xlu0 %v2444, 16
        %v2472 = vpop.permute.xlu0 %2471
        %2473 = vrot.lane.b32.xlu0 %v2445, 16
        %v2474 = vpop.permute.xlu0 %2473
        %2475 = vrot.lane.b32.xlu0 %v2446, 16
        %v2476 = vpop.permute.xlu0 %2475
        %2477 = vrot.lane.b32.xlu0 %v2447, 16
        %v2478 = vpop.permute.xlu0 %2477
        %2479 = vrot.lane.b32.xlu0 %v2448, 16
        %v2480 = vpop.permute.xlu0 %2479
        %v2481 = vunpack.c.l.b16 %v1360
        %v2482 = vunpack.c.l.b16 %v1363
        %v2483 = vunpack.c.l.b16 %v1367
        %v2484 = vunpack.c.l.b16 %v1370
        %v2485 = vunpack.c.l.b16 %v1374
        %v2486 = vunpack.c.l.b16 %v1377
        %v2487 = vunpack.c.l.b16 %v1381
        %v2488 = vunpack.c.l.b16 %v1384
        %v2489 = vunpack.c.l.b16 %v1388
        %v2490 = vunpack.c.l.b16 %v1391
        %v2491 = vunpack.c.l.b16 %v1395
        %v2492 = vunpack.c.l.b16 %v1398
        %v2493 = vunpack.c.l.b16 %v1402
        %v2494 = vunpack.c.l.b16 %v1405
        %v2495 = vunpack.c.l.b16 %v1409
        %v2496 = vunpack.c.l.b16 %v1412
        %v2497 = vunpack.c.l.b16 %v1416
        %v2498 = vunpack.c.l.b16 %v1419
        %v2499 = vunpack.c.l.b16 %v1423
        %v2500 = vunpack.c.l.b16 %v1426
        %v2501 = vunpack.c.l.b16 %v1430
        %v2502 = vunpack.c.l.b16 %v1433
        %v2503 = vunpack.c.l.b16 %v1437
        %v2504 = vunpack.c.l.b16 %v1440
        %v2505 = vunpack.c.l.b16 %v1444
        %v2506 = vunpack.c.l.b16 %v1447
        %v2507 = vunpack.c.l.b16 %v1451
        %v2508 = vunpack.c.l.b16 %v1454
        %v2509 = vunpack.c.l.b16 %v1458
        %v2510 = vunpack.c.l.b16 %v1461
        %v2511 = vunpack.c.l.b16 %v1465
        %v2512 = vunpack.c.l.b16 %v1468
        %v2513 = vpack.c.b16 %v2482, %v2481
        %v2514 = vpack.c.b16 %v2484, %v2483
        %v2515 = vpack.c.b16 %v2486, %v2485
        %v2516 = vpack.c.b16 %v2488, %v2487
        %v2517 = vpack.c.b16 %v2490, %v2489
        %v2518 = vpack.c.b16 %v2492, %v2491
        %v2519 = vpack.c.b16 %v2494, %v2493
        %v2520 = vpack.c.b16 %v2496, %v2495
        %v2521 = vpack.c.b16 %v2498, %v2497
        %v2522 = vpack.c.b16 %v2500, %v2499
        %v2523 = vpack.c.b16 %v2502, %v2501
        %v2524 = vpack.c.b16 %v2504, %v2503
        %v2525 = vpack.c.b16 %v2506, %v2505
        %v2526 = vpack.c.b16 %v2508, %v2507
        %v2527 = vpack.c.b16 %v2510, %v2509
        %v2528 = vpack.c.b16 %v2512, %v2511
        %2529 = vrot.lane.b32.xlu0 %v2513, 20
        %v2530 = vpop.permute.xlu0 %2529
        %2531 = vrot.lane.b32.xlu0 %v2514, 20
        %v2532 = vpop.permute.xlu0 %2531
        %2533 = vrot.lane.b32.xlu0 %v2515, 20
        %v2534 = vpop.permute.xlu0 %2533
        %2535 = vrot.lane.b32.xlu0 %v2516, 20
        %v2536 = vpop.permute.xlu0 %2535
        %2537 = vrot.lane.b32.xlu0 %v2517, 20
        %v2538 = vpop.permute.xlu0 %2537
        %2539 = vrot.lane.b32.xlu0 %v2518, 20
        %v2540 = vpop.permute.xlu0 %2539
        %2541 = vrot.lane.b32.xlu0 %v2519, 20
        %v2542 = vpop.permute.xlu0 %2541
        %2543 = vrot.lane.b32.xlu0 %v2520, 20
        %v2544 = vpop.permute.xlu0 %2543
        %2545 = vrot.lane.b32.xlu0 %v2521, 20
        %v2546 = vpop.permute.xlu0 %2545
        %2547 = vrot.lane.b32.xlu0 %v2522, 20
        %v2548 = vpop.permute.xlu0 %2547
        %2549 = vrot.lane.b32.xlu0 %v2523, 20
        %v2550 = vpop.permute.xlu0 %2549
        %2551 = vrot.lane.b32.xlu0 %v2524, 20
        %v2552 = vpop.permute.xlu0 %2551
        %2553 = vrot.lane.b32.xlu0 %v2525, 20
        %v2554 = vpop.permute.xlu0 %2553
        %2555 = vrot.lane.b32.xlu0 %v2526, 20
        %v2556 = vpop.permute.xlu0 %2555
        %2557 = vrot.lane.b32.xlu0 %v2527, 20
        %v2558 = vpop.permute.xlu0 %2557
        %2559 = vrot.lane.b32.xlu0 %v2528, 20
        %v2560 = vpop.permute.xlu0 %2559
        %v2577 = vunpack.c.l.b16 %v1473
        %v2578 = vunpack.c.l.b16 %v1474
        %v2579 = vunpack.c.l.b16 %v1475
        %v2580 = vunpack.c.l.b16 %v1476
        %v2581 = vunpack.c.l.b16 %v1477
        %v2582 = vunpack.c.l.b16 %v1478
        %v2583 = vunpack.c.l.b16 %v1479
        %v2584 = vunpack.c.l.b16 %v1480
        %v2585 = vunpack.c.l.b16 %v1481
        %v2586 = vunpack.c.l.b16 %v1482
        %v2587 = vunpack.c.l.b16 %v1483
        %v2588 = vunpack.c.l.b16 %v1484
        %v2589 = vunpack.c.l.b16 %v1485
        %v2590 = vunpack.c.l.b16 %v1486
        %v2591 = vunpack.c.l.b16 %v1487
        %v2592 = vunpack.c.l.b16 %v1488
        %v2593 = vunpack.c.l.b16 %v1489
        %v2594 = vunpack.c.l.b16 %v1490
        %v2595 = vunpack.c.l.b16 %v1491
        %v2596 = vunpack.c.l.b16 %v1492
        %v2597 = vunpack.c.l.b16 %v1493
        %v2598 = vunpack.c.l.b16 %v1494
        %v2599 = vunpack.c.l.b16 %v1495
        %v2600 = vunpack.c.l.b16 %v1496
        %v2601 = vunpack.c.l.b16 %v1497
        %v2602 = vunpack.c.l.b16 %v1498
        %v2603 = vunpack.c.l.b16 %v1499
        %v2604 = vunpack.c.l.b16 %v1500
        %v2605 = vunpack.c.l.b16 %v1501
        %v2606 = vunpack.c.l.b16 %v1502
        %v2607 = vunpack.c.l.b16 %v1503
        %v2608 = vunpack.c.l.b16 %v1504
        %v2609 = vpack.c.b16 %v2578, %v2577
        %v2610 = vpack.c.b16 %v2580, %v2579
        %v2611 = vpack.c.b16 %v2582, %v2581
        %v2612 = vpack.c.b16 %v2584, %v2583
        %v2613 = vpack.c.b16 %v2586, %v2585
        %v2614 = vpack.c.b16 %v2588, %v2587
        %v2615 = vpack.c.b16 %v2590, %v2589
        %v2616 = vpack.c.b16 %v2592, %v2591
        %v2617 = vpack.c.b16 %v2594, %v2593
        %v2618 = vpack.c.b16 %v2596, %v2595
        %v2619 = vpack.c.b16 %v2598, %v2597
        %v2620 = vpack.c.b16 %v2600, %v2599
        %v2621 = vpack.c.b16 %v2602, %v2601
        %v2622 = vpack.c.b16 %v2604, %v2603
        %v2623 = vpack.c.b16 %v2606, %v2605
        %v2624 = vpack.c.b16 %v2608, %v2607
        %2625 = vrot.lane.b32.xlu0 %v2609, 24
        %v2626 = vpop.permute.xlu0 %2625
        %2627 = vrot.lane.b32.xlu0 %v2610, 24
        %v2628 = vpop.permute.xlu0 %2627
        %2629 = vrot.lane.b32.xlu0 %v2611, 24
        %v2630 = vpop.permute.xlu0 %2629
        %2631 = vrot.lane.b32.xlu0 %v2612, 24
        %v2632 = vpop.permute.xlu0 %2631
        %2633 = vrot.lane.b32.xlu0 %v2613, 24
        %v2634 = vpop.permute.xlu0 %2633
        %2635 = vrot.lane.b32.xlu0 %v2614, 24
        %v2636 = vpop.permute.xlu0 %2635
        %2637 = vrot.lane.b32.xlu0 %v2615, 24
        %v2638 = vpop.permute.xlu0 %2637
        %2639 = vrot.lane.b32.xlu0 %v2616, 24
        %v2640 = vpop.permute.xlu0 %2639
        %2641 = vrot.lane.b32.xlu0 %v2617, 24
        %v2642 = vpop.permute.xlu0 %2641
        %2643 = vrot.lane.b32.xlu0 %v2618, 24
        %v2644 = vpop.permute.xlu0 %2643
        %2645 = vrot.lane.b32.xlu0 %v2619, 24
        %v2646 = vpop.permute.xlu0 %2645
        %2647 = vrot.lane.b32.xlu0 %v2620, 24
        %v2648 = vpop.permute.xlu0 %2647
        %2649 = vrot.lane.b32.xlu0 %v2621, 24
        %v2650 = vpop.permute.xlu0 %2649
        %2651 = vrot.lane.b32.xlu0 %v2622, 24
        %v2652 = vpop.permute.xlu0 %2651
        %2653 = vrot.lane.b32.xlu0 %v2623, 24
        %v2654 = vpop.permute.xlu0 %2653
        %2655 = vrot.lane.b32.xlu0 %v2624, 24
        %v2656 = vpop.permute.xlu0 %2655
        %v2657 = vunpack.c.l.b16 %v1534
        %v2658 = vunpack.c.l.b16 %v1544
        %v2659 = vunpack.c.l.b16 %v1558
        %v2660 = vunpack.c.l.b16 %v1568
        %v2661 = vunpack.c.l.b16 %v1582
        %v2662 = vunpack.c.l.b16 %v1592
        %v2663 = vunpack.c.l.b16 %v1606
        %v2664 = vunpack.c.l.b16 %v1616
        %v2665 = vunpack.c.l.b16 %v1630
        %v2666 = vunpack.c.l.b16 %v1640
        %v2667 = vunpack.c.l.b16 %v1654
        %v2668 = vunpack.c.l.b16 %v1664
        %v2669 = vunpack.c.l.b16 %v1678
        %v2670 = vunpack.c.l.b16 %v1688
        %v2671 = vunpack.c.l.b16 %v1702
        %v2672 = vunpack.c.l.b16 %v1712
        %v2673 = vunpack.c.l.b16 %v1726
        %v2674 = vunpack.c.l.b16 %v1736
        %v2675 = vunpack.c.l.b16 %v1750
        %v2676 = vunpack.c.l.b16 %v1760
        %v2677 = vunpack.c.l.b16 %v1774
        %v2678 = vunpack.c.l.b16 %v1784
        %v2679 = vunpack.c.l.b16 %v1798
        %v2680 = vunpack.c.l.b16 %v1808
        %v2681 = vunpack.c.l.b16 %v1822
        %v2682 = vunpack.c.l.b16 %v1832
        %v2683 = vunpack.c.l.b16 %v1846
        %v2684 = vunpack.c.l.b16 %v1856
        %v2685 = vunpack.c.l.b16 %v1870
        %v2686 = vunpack.c.l.b16 %v1880
        %v2687 = vunpack.c.l.b16 %v1894
        %v2688 = vunpack.c.l.b16 %v1904
        %v2689 = vpack.c.b16 %v2658, %v2657
        %v2690 = vpack.c.b16 %v2660, %v2659
        %v2691 = vpack.c.b16 %v2662, %v2661
        %v2692 = vpack.c.b16 %v2664, %v2663
        %v2693 = vpack.c.b16 %v2666, %v2665
        %v2694 = vpack.c.b16 %v2668, %v2667
        %v2695 = vpack.c.b16 %v2670, %v2669
        %v2696 = vpack.c.b16 %v2672, %v2671
        %v2697 = vpack.c.b16 %v2674, %v2673
        %v2698 = vpack.c.b16 %v2676, %v2675
        %v2699 = vpack.c.b16 %v2678, %v2677
        %v2700 = vpack.c.b16 %v2680, %v2679
        %v2701 = vpack.c.b16 %v2682, %v2681
        %v2702 = vpack.c.b16 %v2684, %v2683
        %v2703 = vpack.c.b16 %v2686, %v2685
        %v2704 = vpack.c.b16 %v2688, %v2687
        %2705 = vrot.lane.b32.xlu0 %v2689, 28
        %v2706 = vpop.permute.xlu0 %2705
        %2707 = vrot.lane.b32.xlu0 %v2690, 28
        %v2708 = vpop.permute.xlu0 %2707
        %2709 = vrot.lane.b32.xlu0 %v2691, 28
        %v2710 = vpop.permute.xlu0 %2709
        %2711 = vrot.lane.b32.xlu0 %v2692, 28
        %v2712 = vpop.permute.xlu0 %2711
        %2713 = vrot.lane.b32.xlu0 %v2693, 28
        %v2714 = vpop.permute.xlu0 %2713
        %2715 = vrot.lane.b32.xlu0 %v2694, 28
        %v2716 = vpop.permute.xlu0 %2715
        %2717 = vrot.lane.b32.xlu0 %v2695, 28
        %v2718 = vpop.permute.xlu0 %2717
        %2719 = vrot.lane.b32.xlu0 %v2696, 28
        %v2720 = vpop.permute.xlu0 %2719
        %2721 = vrot.lane.b32.xlu0 %v2697, 28
        %v2722 = vpop.permute.xlu0 %2721
        %2723 = vrot.lane.b32.xlu0 %v2698, 28
        %v2724 = vpop.permute.xlu0 %2723
        %2725 = vrot.lane.b32.xlu0 %v2699, 28
        %v2726 = vpop.permute.xlu0 %2725
        %2727 = vrot.lane.b32.xlu0 %v2700, 28
        %v2728 = vpop.permute.xlu0 %2727
        %2729 = vrot.lane.b32.xlu0 %v2701, 28
        %v2730 = vpop.permute.xlu0 %2729
        %2731 = vrot.lane.b32.xlu0 %v2702, 28
        %v2732 = vpop.permute.xlu0 %2731
        %2733 = vrot.lane.b32.xlu0 %v2703, 28
        %v2734 = vpop.permute.xlu0 %2733
        %2735 = vrot.lane.b32.xlu0 %v2704, 28
        %v2736 = vpop.permute.xlu0 %2735
        %v2737 = vunpack.c.l.b16 %v1972
        %v2738 = vunpack.c.l.b16 %v1975
        %v2739 = vunpack.c.l.b16 %v1979
        %v2740 = vunpack.c.l.b16 %v1982
        %v2741 = vunpack.c.l.b16 %v1986
        %v2742 = vunpack.c.l.b16 %v1989
        %v2743 = vunpack.c.l.b16 %v1993
        %v2744 = vunpack.c.l.b16 %v1996
        %v2745 = vunpack.c.l.b16 %v2000
        %v2746 = vunpack.c.l.b16 %v2003
        %v2747 = vunpack.c.l.b16 %v2007
        %v2748 = vunpack.c.l.b16 %v2010
        %v2749 = vunpack.c.l.b16 %v2014
        %v2750 = vunpack.c.l.b16 %v2017
        %v2751 = vunpack.c.l.b16 %v2021
        %v2752 = vunpack.c.l.b16 %v2024
        %v2753 = vunpack.c.l.b16 %v2028
        %v2754 = vunpack.c.l.b16 %v2031
        %v2755 = vunpack.c.l.b16 %v2035
        %v2756 = vunpack.c.l.b16 %v2038
        %v2757 = vunpack.c.l.b16 %v2042
        %v2758 = vunpack.c.l.b16 %v2045
        %v2759 = vunpack.c.l.b16 %v2049
        %v2760 = vunpack.c.l.b16 %v2052
        %v2761 = vunpack.c.l.b16 %v2056
        %v2762 = vunpack.c.l.b16 %v2059
        %v2763 = vunpack.c.l.b16 %v2063
        %v2764 = vunpack.c.l.b16 %v2066
        %v2765 = vunpack.c.l.b16 %v2070
        %v2766 = vunpack.c.l.b16 %v2073
        %v2767 = vunpack.c.l.b16 %v2077
        %v2768 = vunpack.c.l.b16 %v2080
        %v2769 = vpack.c.b16 %v2738, %v2737
        %v2770 = vpack.c.b16 %v2740, %v2739
        %v2771 = vpack.c.b16 %v2742, %v2741
        %v2772 = vpack.c.b16 %v2744, %v2743
        %v2773 = vpack.c.b16 %v2746, %v2745
        %v2774 = vpack.c.b16 %v2748, %v2747
        %v2775 = vpack.c.b16 %v2750, %v2749
        %v2776 = vpack.c.b16 %v2752, %v2751
        %v2777 = vpack.c.b16 %v2754, %v2753
        %v2778 = vpack.c.b16 %v2756, %v2755
        %v2779 = vpack.c.b16 %v2758, %v2757
        %v2780 = vpack.c.b16 %v2760, %v2759
        %v2781 = vpack.c.b16 %v2762, %v2761
        %v2782 = vpack.c.b16 %v2764, %v2763
        %v2783 = vpack.c.b16 %v2766, %v2765
        %v2784 = vpack.c.b16 %v2768, %v2767
        %2785 = vrot.lane.b32.xlu0 %v2769, 32
        %v2786 = vpop.permute.xlu0 %2785
        %2787 = vrot.lane.b32.xlu0 %v2770, 32
        %v2788 = vpop.permute.xlu0 %2787
        %2789 = vrot.lane.b32.xlu0 %v2771, 32
        %v2790 = vpop.permute.xlu0 %2789
        %2791 = vrot.lane.b32.xlu0 %v2772, 32
        %v2792 = vpop.permute.xlu0 %2791
        %2793 = vrot.lane.b32.xlu0 %v2773, 32
        %v2794 = vpop.permute.xlu0 %2793
        %2795 = vrot.lane.b32.xlu0 %v2774, 32
        %v2796 = vpop.permute.xlu0 %2795
        %2797 = vrot.lane.b32.xlu0 %v2775, 32
        %v2798 = vpop.permute.xlu0 %2797
        %2799 = vrot.lane.b32.xlu0 %v2776, 32
        %v2800 = vpop.permute.xlu0 %2799
        %2801 = vrot.lane.b32.xlu0 %v2777, 32
        %v2802 = vpop.permute.xlu0 %2801
        %2803 = vrot.lane.b32.xlu0 %v2778, 32
        %v2804 = vpop.permute.xlu0 %2803
        %2805 = vrot.lane.b32.xlu0 %v2779, 32
        %v2806 = vpop.permute.xlu0 %2805
        %2807 = vrot.lane.b32.xlu0 %v2780, 32
        %v2808 = vpop.permute.xlu0 %2807
        %2809 = vrot.lane.b32.xlu0 %v2781, 32
        %v2810 = vpop.permute.xlu0 %2809
        %2811 = vrot.lane.b32.xlu0 %v2782, 32
        %v2812 = vpop.permute.xlu0 %2811
        %2813 = vrot.lane.b32.xlu0 %v2783, 32
        %v2814 = vpop.permute.xlu0 %2813
        %2815 = vrot.lane.b32.xlu0 %v2784, 32
        %v2816 = vpop.permute.xlu0 %2815
        %vm2817 = vcmask 31744
        %v2820 = vsel %vm2817, %v2129, %v2194
        %v2823 = vsel %vm2817, %v2130, %v2196
        %v2826 = vsel %vm2817, %v2131, %v2198
        %v2829 = vsel %vm2817, %v2132, %v2200
        %v2832 = vsel %vm2817, %v2133, %v2202
        %v2835 = vsel %vm2817, %v2134, %v2204
        %v2838 = vsel %vm2817, %v2135, %v2206
        %v2841 = vsel %vm2817, %v2136, %v2208
        %v2844 = vsel %vm2817, %v2137, %v2210
        %v2847 = vsel %vm2817, %v2138, %v2212
        %v2850 = vsel %vm2817, %v2139, %v2214
        %v2853 = vsel %vm2817, %v2140, %v2216
        %v2856 = vsel %vm2817, %v2141, %v2218
        %v2859 = vsel %vm2817, %v2142, %v2220
        %v2862 = vsel %vm2817, %v2143, %v2222
        %v2865 = vsel %vm2817, %v2144, %v2224
        %vm2866 = vcmask 64512
        %v2868 = vsel %vm2866, %v2820, %v2274
        %v2870 = vsel %vm2866, %v2823, %v2276
        %v2872 = vsel %vm2866, %v2826, %v2278
        %v2874 = vsel %vm2866, %v2829, %v2280
        %v2876 = vsel %vm2866, %v2832, %v2282
        %v2878 = vsel %vm2866, %v2835, %v2284
        %v2880 = vsel %vm2866, %v2838, %v2286
        %v2882 = vsel %vm2866, %v2841, %v2288
        %v2884 = vsel %vm2866, %v2844, %v2290
        %v2886 = vsel %vm2866, %v2847, %v2292
        %v2888 = vsel %vm2866, %v2850, %v2294
        %v2890 = vsel %vm2866, %v2853, %v2296
        %v2892 = vsel %vm2866, %v2856, %v2298
        %v2894 = vsel %vm2866, %v2859, %v2300
        %v2896 = vsel %vm2866, %v2862, %v2302
        %v2898 = vsel %vm2866, %v2865, %v2304
        %vm2899 = vcmask 97280
        %v2901 = vsel %vm2899, %v2868, %v2370
        %v2903 = vsel %vm2899, %v2870, %v2372
        %v2905 = vsel %vm2899, %v2872, %v2374
        %v2907 = vsel %vm2899, %v2874, %v2376
        %v2909 = vsel %vm2899, %v2876, %v2378
        %v2911 = vsel %vm2899, %v2878, %v2380
        %v2913 = vsel %vm2899, %v2880, %v2382
        %v2915 = vsel %vm2899, %v2882, %v2384
        %v2917 = vsel %vm2899, %v2884, %v2386
        %v2919 = vsel %vm2899, %v2886, %v2388
        %v2921 = vsel %vm2899, %v2888, %v2390
        %v2923 = vsel %vm2899, %v2890, %v2392
        %v2925 = vsel %vm2899, %v2892, %v2394
        %v2927 = vsel %vm2899, %v2894, %v2396
        %v2929 = vsel %vm2899, %v2896, %v2398
        %v2931 = vsel %vm2899, %v2898, %v2400
        %vm2932 = vcmask 130048
        %v2934 = vsel %vm2932, %v2901, %v2450
        %v2936 = vsel %vm2932, %v2903, %v2452
        %v2938 = vsel %vm2932, %v2905, %v2454
        %v2940 = vsel %vm2932, %v2907, %v2456
        %v2942 = vsel %vm2932, %v2909, %v2458
        %v2944 = vsel %vm2932, %v2911, %v2460
        %v2946 = vsel %vm2932, %v2913, %v2462
        %v2948 = vsel %vm2932, %v2915, %v2464
        %v2950 = vsel %vm2932, %v2917, %v2466
        %v2952 = vsel %vm2932, %v2919, %v2468
        %v2954 = vsel %vm2932, %v2921, %v2470
        %v2956 = vsel %vm2932, %v2923, %v2472
        %v2958 = vsel %vm2932, %v2925, %v2474
        %v2960 = vsel %vm2932, %v2927, %v2476
        %v2962 = vsel %vm2932, %v2929, %v2478
        %v2964 = vsel %vm2932, %v2931, %v2480
        %vm2965 = vcmask 162816
        %v2967 = vsel %vm2965, %v2934, %v2530
        %v2969 = vsel %vm2965, %v2936, %v2532
        %v2971 = vsel %vm2965, %v2938, %v2534
        %v2973 = vsel %vm2965, %v2940, %v2536
        %v2975 = vsel %vm2965, %v2942, %v2538
        %v2977 = vsel %vm2965, %v2944, %v2540
        %v2979 = vsel %vm2965, %v2946, %v2542
        %v2981 = vsel %vm2965, %v2948, %v2544
        %v2983 = vsel %vm2965, %v2950, %v2546
        %v2985 = vsel %vm2965, %v2952, %v2548
        %v2987 = vsel %vm2965, %v2954, %v2550
        %v2989 = vsel %vm2965, %v2956, %v2552
        %v2991 = vsel %vm2965, %v2958, %v2554
        %v2993 = vsel %vm2965, %v2960, %v2556
        %v2995 = vsel %vm2965, %v2962, %v2558
        %v2997 = vsel %vm2965, %v2964, %v2560
        %vm2998 = vcmask 195584
        %v3000 = vsel %vm2998, %v2967, %v2626
        %v3002 = vsel %vm2998, %v2969, %v2628
        %v3004 = vsel %vm2998, %v2971, %v2630
        %v3006 = vsel %vm2998, %v2973, %v2632
        %v3008 = vsel %vm2998, %v2975, %v2634
        %v3010 = vsel %vm2998, %v2977, %v2636
        %v3012 = vsel %vm2998, %v2979, %v2638
        %v3014 = vsel %vm2998, %v2981, %v2640
        %v3016 = vsel %vm2998, %v2983, %v2642
        %v3018 = vsel %vm2998, %v2985, %v2644
        %v3020 = vsel %vm2998, %v2987, %v2646
        %v3022 = vsel %vm2998, %v2989, %v2648
        %v3024 = vsel %vm2998, %v2991, %v2650
        %v3026 = vsel %vm2998, %v2993, %v2652
        %v3028 = vsel %vm2998, %v2995, %v2654
        %v3030 = vsel %vm2998, %v2997, %v2656
        %vm3031 = vcmask 228352
        %v3033 = vsel %vm3031, %v3000, %v2706
        %v3035 = vsel %vm3031, %v3002, %v2708
        %v3037 = vsel %vm3031, %v3004, %v2710
        %v3039 = vsel %vm3031, %v3006, %v2712
        %v3041 = vsel %vm3031, %v3008, %v2714
        %v3043 = vsel %vm3031, %v3010, %v2716
        %v3045 = vsel %vm3031, %v3012, %v2718
        %v3047 = vsel %vm3031, %v3014, %v2720
        %v3049 = vsel %vm3031, %v3016, %v2722
        %v3051 = vsel %vm3031, %v3018, %v2724
        %v3053 = vsel %vm3031, %v3020, %v2726
        %v3055 = vsel %vm3031, %v3022, %v2728
        %v3057 = vsel %vm3031, %v3024, %v2730
        %v3059 = vsel %vm3031, %v3026, %v2732
        %v3061 = vsel %vm3031, %v3028, %v2734
        %v3063 = vsel %vm3031, %v3030, %v2736
        %vm3064 = vcmask 261120
        %v3066 = vsel %vm3064, %v3033, %v2786
        %v3068 = vsel %vm3064, %v3035, %v2788
        %v3070 = vsel %vm3064, %v3037, %v2790
        %v3072 = vsel %vm3064, %v3039, %v2792
        %v3074 = vsel %vm3064, %v3041, %v2794
        %v3076 = vsel %vm3064, %v3043, %v2796
        %v3078 = vsel %vm3064, %v3045, %v2798
        %v3080 = vsel %vm3064, %v3047, %v2800
        %v3082 = vsel %vm3064, %v3049, %v2802
        %v3084 = vsel %vm3064, %v3051, %v2804
        %v3086 = vsel %vm3064, %v3053, %v2806
        %v3088 = vsel %vm3064, %v3055, %v2808
        %v3090 = vsel %vm3064, %v3057, %v2810
        %v3092 = vsel %vm3064, %v3059, %v2812
        %v3094 = vsel %vm3064, %v3061, %v2814
        %v3096 = vsel %vm3064, %v3063, %v2816
        %v3097 = vld [vmem:[#allocation5] sm:$0xf]
        %v3098 = vld [vmem:[#allocation5 + $0x4] sm:$0xf]
        %v3099 = vld [vmem:[#allocation5 + $0x8] sm:$0xf]
        %v3100 = vld [vmem:[#allocation5 + $0xc] sm:$0xf]
        %v3101 = vld [vmem:[#allocation5 + $0x10] sm:$0x3]
        %v3107 = vunpack.c.l.b16 %v3097
        %v3108 = vunpack.c.l.b16 %v3098
        %v3109 = vunpack.c.l.b16 %v3099
        %v3110 = vunpack.c.l.b16 %v3100
        %v3111 = vunpack.c.l.b16 %v3101
        %v3112 = vpack.c.b16 %v3108, %v3107
        %v3113 = vpack.c.b16 %v3110, %v3109
        %v3114 = vpack.c.b16 %v3111, %v3111
        %vm3117 = vcmask 293888
        %v3118 = vsel %vm3117, %v3066, 0
        %v3120 = vsel %vm3117, %v3068, 0
        %v3122 = vsel %vm3117, %v3070, 0
        %v3124 = vsel %vm3117, %v3072, 0
        %v3126 = vsel %vm3117, %v3074, 0
        %v3128 = vsel %vm3117, %v3076, 0
        %v3130 = vsel %vm3117, %v3078, 0
        %v3132 = vsel %vm3117, %v3080, 0
        %v3134 = vsel %vm3117, %v3082, 0
        %v3136 = vsel %vm3117, %v3084, 0
        %v3138 = vsel %vm3117, %v3086, 0
        %v3140 = vsel %vm3117, %v3088, 0
        %v3142 = vsel %vm3117, %v3090, 0
        %v3144 = vsel %vm3117, %v3092, 0
        %v3146 = vsel %vm3117, %v3094, 0
        %v3148 = vsel %vm3117, %v3096, 0
        %vm3150 = vcmask 1041408
        %v3152 = vsel %vm3150, %v3114, 0
        %3154 = vmatprep.subr.bf16.mxu0 0
        %3155 = vmatpush1.bf16.msra.mxu0 %v3112
        %3156 = vmatprep.subr.bf16.mxu0 0
        %3157 = vmatpush1.bf16.msra.mxu0 %v3113
        %3158 = vmatprep.subr.bf16.mxu0 0
        %3159 = vmatpush1.bf16.msra.mxu0 %v3152
        %3160 = vmatprep.subr.bf16.mxu0 0
        %3161 = vmatpush1.bf16.msra.mxu0 0
        %3162 = vmatprep.subr.bf16.mxu0 0
        %3163 = vmatpush1.bf16.msra.mxu0 0
        %3164 = vmatprep.subr.bf16.mxu0 0
        %3165 = vmatpush1.bf16.msra.mxu0 0
        %3166 = vmatprep.subr.bf16.mxu0 0
        %3167 = vmatpush1.bf16.msra.mxu0 0
        %3168 = vmatprep.subr.bf16.mxu0 0
        %3169 = vmatpush1.bf16.msra.mxu0 0
        %3170 = vmatprep.subr.bf16.mxu0 0
        %3171 = vmatpush1.bf16.msra.mxu0 0
        %3172 = vmatprep.subr.bf16.mxu0 0
        %3173 = vmatpush1.bf16.msra.mxu0 0
        %3174 = vmatprep.subr.bf16.mxu0 0
        %3175 = vmatpush1.bf16.msra.mxu0 0
        %3176 = vmatprep.subr.bf16.mxu0 0
        %3177 = vmatpush1.bf16.msra.mxu0 0
        %3178 = vmatprep.subr.bf16.mxu0 0
        %3179 = vmatpush1.bf16.msra.mxu0 0
        %3180 = vmatprep.subr.bf16.mxu0 0
        %3181 = vmatpush1.bf16.msra.mxu0 0
        %3182 = vmatprep.subr.bf16.mxu0 0
        %3183 = vmatpush1.bf16.msra.mxu0 0
        %3184 = vmatprep.subr.bf16.mxu0 0
        %3185 = vmatpush1.bf16.msra.mxu0 0
        %3186 = vmatprep.mubr.bf16.mxu0 0
        %3187 = vmatmul.mubr.bf16.gmra.mrb[0].mxu0 %v3118
        %v3188 = vpop.f32.mrb[0].mxu0
        %v3189 = vadd.f32 0.0, %v3188
        %v3190 = vpop.f32.mrb[0].mxu0
        %v3191 = vpop.f32.mrb[0].mxu0
        %v3192 = vadd.f32 0.0, %v3191
        %v3193 = vpop.f32.mrb[0].mxu0
        %3194 = vmatprep.mubr.bf16.mxu0 0
        %3195 = vmatmul.mubr.bf16.gmra.mrb[0].mxu0 %v3120
        %v3196 = vpop.f32.mrb[0].mxu0
        %v3197 = vadd.f32 0.0, %v3196
        %v3198 = vpop.f32.mrb[0].mxu0
        %v3199 = vpop.f32.mrb[0].mxu0
        %v3200 = vadd.f32 0.0, %v3199
        %v3201 = vpop.f32.mrb[0].mxu0
        %3202 = vmatprep.mubr.bf16.mxu0 0
        %3203 = vmatmul.mubr.bf16.gmra.mrb[0].mxu0 %v3122
        %v3204 = vpop.f32.mrb[0].mxu0
        %v3205 = vadd.f32 0.0, %v3204
        %v3206 = vpop.f32.mrb[0].mxu0
        %v3207 = vpop.f32.mrb[0].mxu0
        %v3208 = vadd.f32 0.0, %v3207
        %v3209 = vpop.f32.mrb[0].mxu0
        %3210 = vmatprep.mubr.bf16.mxu0 0
        %3211 = vmatmul.mubr.bf16.gmra.mrb[0].mxu0 %v3124
        %v3212 = vpop.f32.mrb[0].mxu0
        %v3213 = vadd.f32 0.0, %v3212
        %v3214 = vpop.f32.mrb[0].mxu0
        %v3215 = vpop.f32.mrb[0].mxu0
        %v3216 = vadd.f32 0.0, %v3215
        %v3217 = vpop.f32.mrb[0].mxu0
        %3218 = vmatprep.mubr.bf16.mxu0 0
        %3219 = vmatmul.mubr.bf16.gmra.mrb[0].mxu0 %v3126
        %v3220 = vpop.f32.mrb[0].mxu0
        %v3221 = vadd.f32 0.0, %v3220
        %v3222 = vpop.f32.mrb[0].mxu0
        %v3223 = vpop.f32.mrb[0].mxu0
        %v3224 = vadd.f32 0.0, %v3223
        %v3225 = vpop.f32.mrb[0].mxu0
        %3226 = vmatprep.mubr.bf16.mxu0 0
        %3227 = vmatmul.mubr.bf16.gmra.mrb[0].mxu0 %v3128
        %v3228 = vpop.f32.mrb[0].mxu0
        %v3229 = vadd.f32 0.0, %v3228
        %v3230 = vpop.f32.mrb[0].mxu0
        %v3231 = vpop.f32.mrb[0].mxu0
        %v3232 = vadd.f32 0.0, %v3231
        %v3233 = vpop.f32.mrb[0].mxu0
        %3234 = vmatprep.mubr.bf16.mxu0 0
        %3235 = vmatmul.mubr.bf16.gmra.mrb[0].mxu0 %v3130
        %v3236 = vpop.f32.mrb[0].mxu0
        %v3237 = vadd.f32 0.0, %v3236
        %v3238 = vpop.f32.mrb[0].mxu0
        %v3239 = vpop.f32.mrb[0].mxu0
        %v3240 = vadd.f32 0.0, %v3239
        %v3241 = vpop.f32.mrb[0].mxu0
        %3242 = vmatprep.mubr.bf16.mxu0 0
        %3243 = vmatmul.mubr.bf16.gmra.mrb[0].mxu0 %v3132
        %v3244 = vpop.f32.mrb[0].mxu0
        %v3245 = vadd.f32 0.0, %v3244
        %v3246 = vpop.f32.mrb[0].mxu0
        %v3247 = vpop.f32.mrb[0].mxu0
        %v3248 = vadd.f32 0.0, %v3247
        %v3249 = vpop.f32.mrb[0].mxu0
        %3250 = vmatprep.mubr.bf16.mxu0 0
        %3251 = vmatmul.mubr.bf16.gmra.mrb[0].mxu0 %v3134
        %v3252 = vpop.f32.mrb[0].mxu0
        %v3253 = vadd.f32 0.0, %v3252
        %v3254 = vpop.f32.mrb[0].mxu0
        %v3255 = vpop.f32.mrb[0].mxu0
        %v3256 = vadd.f32 0.0, %v3255
        %v3257 = vpop.f32.mrb[0].mxu0
        %3258 = vmatprep.mubr.bf16.mxu0 0
        %3259 = vmatmul.mubr.bf16.gmra.mrb[0].mxu0 %v3136
        %v3260 = vpop.f32.mrb[0].mxu0
        %v3261 = vadd.f32 0.0, %v3260
        %v3262 = vpop.f32.mrb[0].mxu0
        %v3263 = vpop.f32.mrb[0].mxu0
        %v3264 = vadd.f32 0.0, %v3263
        %v3265 = vpop.f32.mrb[0].mxu0
        %3266 = vmatprep.mubr.bf16.mxu0 0
        %3267 = vmatmul.mubr.bf16.gmra.mrb[0].mxu0 %v3138
        %v3268 = vpop.f32.mrb[0].mxu0
        %v3269 = vadd.f32 0.0, %v3268
        %v3270 = vpop.f32.mrb[0].mxu0
        %v3271 = vpop.f32.mrb[0].mxu0
        %v3272 = vadd.f32 0.0, %v3271
        %v3273 = vpop.f32.mrb[0].mxu0
        %3274 = vmatprep.mubr.bf16.mxu0 0
        %3275 = vmatmul.mubr.bf16.gmra.mrb[0].mxu0 %v3140
        %v3276 = vpop.f32.mrb[0].mxu0
        %v3277 = vadd.f32 0.0, %v3276
        %v3278 = vpop.f32.mrb[0].mxu0
        %v3279 = vpop.f32.mrb[0].mxu0
        %v3280 = vadd.f32 0.0, %v3279
        %v3281 = vpop.f32.mrb[0].mxu0
        %3282 = vmatprep.mubr.bf16.mxu0 0
        %3283 = vmatmul.mubr.bf16.gmra.mrb[0].mxu0 %v3142
        %v3284 = vpop.f32.mrb[0].mxu0
        %v3285 = vadd.f32 0.0, %v3284
        %v3286 = vpop.f32.mrb[0].mxu0
        %v3287 = vpop.f32.mrb[0].mxu0
        %v3288 = vadd.f32 0.0, %v3287
        %v3289 = vpop.f32.mrb[0].mxu0
        %3290 = vmatprep.mubr.bf16.mxu0 0
        %3291 = vmatmul.mubr.bf16.gmra.mrb[0].mxu0 %v3144
        %v3292 = vpop.f32.mrb[0].mxu0
        %v3293 = vadd.f32 0.0, %v3292
        %v3294 = vpop.f32.mrb[0].mxu0
        %v3295 = vpop.f32.mrb[0].mxu0
        %v3296 = vadd.f32 0.0, %v3295
        %v3297 = vpop.f32.mrb[0].mxu0
        %3298 = vmatprep.mubr.bf16.mxu0 0
        %3299 = vmatmul.mubr.bf16.gmra.mrb[0].mxu0 %v3146
        %v3300 = vpop.f32.mrb[0].mxu0
        %v3301 = vadd.f32 0.0, %v3300
        %v3302 = vpop.f32.mrb[0].mxu0
        %v3303 = vpop.f32.mrb[0].mxu0
        %v3304 = vadd.f32 0.0, %v3303
        %v3305 = vpop.f32.mrb[0].mxu0
        %3306 = vmatprep.mubr.bf16.mxu0 0
        %3307 = vmatmul.mubr.bf16.gmra.mrb[0].mxu0 %v3148
        %v3308 = vpop.f32.mrb[0].mxu0
        %v3309 = vadd.f32 0.0, %v3308
        %v3310 = vpop.f32.mrb[0].mxu0
        %v3311 = vpop.f32.mrb[0].mxu0
        %v3312 = vadd.f32 0.0, %v3311
        %v3313 = vpop.f32.mrb[0].mxu0
        %3314 = vdwg.mxu0
        %v3315 = vadd.f32 %v238, %v3189
        %v3316 = vadd.f32 %v238, %v3192
        %v3317 = vadd.f32 %v238, %v3197
        %v3318 = vadd.f32 %v238, %v3200
        %v3319 = vadd.f32 %v238, %v3205
        %v3320 = vadd.f32 %v238, %v3208
        %v3321 = vadd.f32 %v238, %v3213
        %v3322 = vadd.f32 %v238, %v3216
        %v3323 = vadd.f32 %v238, %v3221
        %v3324 = vadd.f32 %v238, %v3224
        %v3325 = vadd.f32 %v238, %v3229
        %v3326 = vadd.f32 %v238, %v3232
        %v3327 = vadd.f32 %v238, %v3237
        %v3328 = vadd.f32 %v238, %v3240
        %v3329 = vadd.f32 %v238, %v3245
        %v3330 = vadd.f32 %v238, %v3248
        %v3331 = vadd.f32 %v238, %v3253
        %v3332 = vadd.f32 %v238, %v3256
        %v3333 = vadd.f32 %v238, %v3261
        %v3334 = vadd.f32 %v238, %v3264
        %v3335 = vadd.f32 %v238, %v3269
        %v3336 = vadd.f32 %v238, %v3272
        %v3337 = vadd.f32 %v238, %v3277
        %v3338 = vadd.f32 %v238, %v3280
        %v3339 = vadd.f32 %v238, %v3285
        %v3340 = vadd.f32 %v238, %v3288
        %v3341 = vadd.f32 %v238, %v3293
        %v3342 = vadd.f32 %v238, %v3296
        %v3343 = vadd.f32 %v238, %v3301
        %v3344 = vadd.f32 %v238, %v3304
        %v3345 = vadd.f32 %v238, %v3309
        %v3346 = vadd.f32 %v238, %v3312
        %3347 = vst.msk [vmem:[%s229] sm:$0xff] %vm2866, %v3315
        %3348 = vst.msk [vmem:[%s229 + $0x8] sm:$0xff] %vm2866, %v3316
        %3349 = vst.msk [vmem:[%s229 + $0x10] sm:$0xff] %vm2866, %v3317
        %3350 = vst.msk [vmem:[%s229 + $0x18] sm:$0xff] %vm2866, %v3318
        %3351 = vst.msk [vmem:[%s229 + $0x20] sm:$0xff] %vm2866, %v3319
        %3352 = vst.msk [vmem:[%s229 + $0x28] sm:$0xff] %vm2866, %v3320
        %3353 = vst.msk [vmem:[%s229 + $0x30] sm:$0xff] %vm2866, %v3321
        %3354 = vst.msk [vmem:[%s229 + $0x38] sm:$0xff] %vm2866, %v3322
        %3355 = vst.msk [vmem:[%s229 + $0x40] sm:$0xff] %vm2866, %v3323
        %3356 = vst.msk [vmem:[%s229 + $0x48] sm:$0xff] %vm2866, %v3324
        %3357 = vst.msk [vmem:[%s229 + $0x50] sm:$0xff] %vm2866, %v3325
        %3358 = vst.msk [vmem:[%s229 + $0x58] sm:$0xff] %vm2866, %v3326
        %3359 = vst.msk [vmem:[%s229 + $0x60] sm:$0xff] %vm2866, %v3327
        %3360 = vst.msk [vmem:[%s229 + $0x68] sm:$0xff] %vm2866, %v3328
        %3361 = vst.msk [vmem:[%s229 + $0x70] sm:$0xff] %vm2866, %v3329
        %3362 = vst.msk [vmem:[%s229 + $0x78] sm:$0xff] %vm2866, %v3330
        %3363 = vst.msk [vmem:[%s229 + $0x80] sm:$0xff] %vm2866, %v3331
        %3364 = vst.msk [vmem:[%s229 + $0x88] sm:$0xff] %vm2866, %v3332
        %3365 = vst.msk [vmem:[%s229 + $0x90] sm:$0xff] %vm2866, %v3333
        %3366 = vst.msk [vmem:[%s229 + $0x98] sm:$0xff] %vm2866, %v3334
        %3367 = vst.msk [vmem:[%s229 + $0xa0] sm:$0xff] %vm2866, %v3335
        %3368 = vst.msk [vmem:[%s229 + $0xa8] sm:$0xff] %vm2866, %v3336
        %3369 = vst.msk [vmem:[%s229 + $0xb0] sm:$0xff] %vm2866, %v3337
        %3370 = vst.msk [vmem:[%s229 + $0xb8] sm:$0xff] %vm2866, %v3338
        %3371 = vst.msk [vmem:[%s229 + $0xc0] sm:$0xff] %vm2866, %v3339
        %3372 = vst.msk [vmem:[%s229 + $0xc8] sm:$0xff] %vm2866, %v3340
        %3373 = vst.msk [vmem:[%s229 + $0xd0] sm:$0xff] %vm2866, %v3341
        %3374 = vst.msk [vmem:[%s229 + $0xd8] sm:$0xff] %vm2866, %v3342
        %3375 = vst.msk [vmem:[%s229 + $0xe0] sm:$0xff] %vm2866, %v3343
        %3376 = vst.msk [vmem:[%s229 + $0xe8] sm:$0xff] %vm2866, %v3344
        %3377 = vst.msk [vmem:[%s229 + $0xf0] sm:$0xff] %vm2866, %v3345
        %3378 = vst.msk [vmem:[%s229 + $0xf8] sm:$0xff] %vm2866, %v3346
        %s3379 = sand.u32 %s111, 1
        %s3380 = scalar_lea.sflag [#allocation4], %s3379
        %s3381 = sand.u32 %s111, 1
        %s3382 = smul.addr %s3381, 256
        %s3383 = scalar_lea.vmem [#allocation8], %s3382
        // Predicated region
        $region45: #{tpu_custom_call.1} parent=31 // pred_check
          %p3384 = pneg %p121
        $region46: #{tpu_custom_call.1} parent=31 // pred_check_branch
          %3386 = sbr.rel (%p3384) target = $region48
        $region47: #{tpu_custom_call.1} parent=31 // pred_region
          %s3387 = smul.u32 32, %s26
          %s3389 = ssub.s32 4096, 4096
          %3390 = vsyncadd %s3380, %s3389
          %s3391 = smul.addr %s25, 32
          %s3392 = sadd.s32 %s3387, %s3391
          %s3393 = smul.addr %s3392, 128
          %s3394 = scalar_lea.hbm %s3, %s3393
          %s3395 = sshll.u32 %s3383, 4
          %s3396 = int_to_ptr.vmem [resolvable:$true] %s3395
          %3401 = dma.vmem_to_hbm [thread:$0]  %s3396, 4096, %s3394, %s3380, 128, 128, 8
        $region48: #{tpu_custom_call.1} parent=31 // pred_fallthru
          _
      $region32: #{tpu_custom_call.1} parent=5 // pred_fallthru
        _
      %p3402 = scmp.le.s32.totalorder 2, %s16
      // Predicated region
      $region49: #{tpu_custom_call.1} parent=5 // pred_check
        %p3403 = pneg %p3402
      $region50: #{tpu_custom_call.1} parent=5 // pred_check_branch
        %3405 = sbr.rel (%p3403) target = $region52
      $region51: #{tpu_custom_call.1} parent=5 // pred_region
        %s3406 = ssub.s32 %s16, 2
        // Predicated region
        $region53: #{tpu_custom_call.1} parent=51 // pred_check
          %p3407 = pneg %p127
        $region54: #{tpu_custom_call.1} parent=51 // pred_check_branch
          %3409 = sbr.rel (%p3407) target = $region56
        $region55: #{tpu_custom_call.1} parent=51 // pred_region
          %s3410 = sand.u32 %s112, 1
          %s3411 = scalar_lea.sflag [#allocation4], %s3410
          %s3412 = sand.u32 %s112, 1
          %s3413 = smul.addr %s3412, 256
          %s3414 = scalar_lea.vmem [#allocation8], %s3413
          %3415 = dma.done %s3411, 4096
        $region56: #{tpu_custom_call.1} parent=51 // pred_fallthru
          _
      $region52: #{tpu_custom_call.1} parent=5 // pred_fallthru
        _
    $region6: #{tpu_custom_call.1} parent=1 // loop_footer
      %s20 = sadd.s32 1, %s16
    $region7: #{tpu_custom_call.1} parent=1 // loop_footer_branch
      %15 = sbr.rel target = $region3
    $region8: #{tpu_custom_call.1} parent=1 // loop_exit
      _
    %3416 = vsyncpa [#allocation3], 1
    %s3417 = scalar_lea.sflag [#allocation3], 1
    %3418 = vsyncpa %s3417, 1
    %3419 = vsyncpa [#allocation6], 1
    %3420 = vsyncpa [#allocation4], 1
    %s3421 = scalar_lea.sflag [#allocation4], 1
    %3422 = vsyncpa %s3421, 1

</llo_original>
